<compile_context>
chip_gen: v5e
topology: v5e:2x2
jax: 0.10.0
libtpu: 0.0.40
codegen_flags: <defaults>
</compile_context>

<pallas_src>
import functools

import jax
import jax.numpy as jnp
import numpy as np
from jax.experimental import pallas as pl
from jax.experimental.pallas import tpu as pltpu


def _cx_kernel(mu_ref, a_ref, b_hbm_ref, o_ref, bn_ref, colmax_ref, *,
               h, n_valid, tile_i, mask_tail):
    # mu_ref:     (ch_p, 1)        per-channel mean of targets (padded chans are 0)
    # a_ref:      (1, ch_p, T_I)   inputs i-tile   (channels x spatial-i slice)
    # b_hbm_ref:  (bs, ch_p, N)    raw targets, left in HBM (memory_space=pl.ANY)
    # o_ref:      (1, 8, 128)      per-batch CX scalar broadcast (written on last i)
    # bn_ref:     (ch_p, N) f32    centered + L2-normalized targets (per batch elem)
    # colmax_ref: (1, N) f32       running max over i of cx[i, j]
    bi = pl.program_id(0)
    ii = pl.program_id(1)

    mu = mu_ref[...]                                      # (ch_p, 1) f32

    @pl.when(ii == 0)
    def _():
        # Hoisted once per batch element: single exposed DMA of the raw targets
        # for this batch element, then center + L2-normalize in place.
        pltpu.sync_copy(b_hbm_ref.at[bi], bn_ref)
        bc = bn_ref[...] - mu                             # (ch_p, N)
        bn_ref[...] = bc * jax.lax.rsqrt(jnp.sum(bc * bc, axis=0, keepdims=True))
        # cx is non-negative, so 0 is a valid identity for the running max.
        colmax_ref[...] = jnp.zeros_like(colmax_ref)

    # Center + L2-normalize the inputs tile (visited exactly once -> no redundancy).
    a = a_ref[0] - mu                                     # (ch_p, T_I)
    a = a * jax.lax.rsqrt(jnp.sum(a * a, axis=0, keepdims=True))

    # Cosine-similarity slab S[i, j] = sum_c a[c, i] * bn[c, j]  -> (T_I, N) on MXU.
    s = jax.lax.dot_general(
        a, bn_ref[...], dimension_numbers=(((0,), (0,)), ((), ())),
        preferred_element_type=jnp.float32)

    # d = 1 - s ; d~ = d / (min_j d + 1e-5) ; w = exp((1 - d~)/h) = exp(1/h - d*r).
    d = 1.0 - s                                           # (T_I, N)
    d_min = jnp.min(d, axis=1, keepdims=True)             # (T_I, 1)
    r = 1.0 / ((d_min + 1e-5) * h)                        # (T_I, 1)
    w = jnp.exp((1.0 / h) - d * r)                        # (T_I, N) stable form
    cx = w * (1.0 / (jnp.sum(w, axis=1, keepdims=True) + 1e-8))

    if mask_tail:
        # Partial tail tile: rows past n_valid hold unspecified padding -> mask them
        # out of the column max (they only affect themselves up to this point).
        row_ids = jax.lax.broadcasted_iota(jnp.int32, (cx.shape[0], 1), 0) + ii * tile_i
        cx = jnp.where(row_ids < n_valid, cx, 0.0)

    # Accumulate column max (max over i) across i-tiles.
    colmax_ref[...] = jnp.maximum(colmax_ref[...],
                                  jnp.max(cx, axis=0, keepdims=True))

    @pl.when(ii == pl.num_programs(1) - 1)
    def _():
        CX = jnp.mean(colmax_ref[...])                    # scalar for this batch elem
        o_ref[...] = jnp.broadcast_to(CX, o_ref.shape).astype(o_ref.dtype)


def _vmem_capacity_bytes():
    """Per-TensorCore VMEM capacity; conservative 64 MiB (v7x) if unknown."""
    try:
        info = pltpu.get_tpu_info()
        cap = getattr(info, "vmem_capacity_bytes", None)
        if cap:
            return int(cap)
    except Exception:
        pass
    return 64 * 1024 * 1024


def _footprint_bytes(t, n, ch_p):
    # ~3 live (t, n) f32 slabs (s/w/cx) + normalized A (ch_p, t) + double-buffered
    # A input tile + resident normalized-B scratch + col-max scratch + slack.
    return 4 * (3 * t * n + 3 * ch_p * t + ch_p * n + 9 * n) + (2 << 20)


def _pick_tile_i(n, ch_p, vmem_cap):
    """Largest row tile (power-of-two multiple of 128, or full n) whose working set
    fits in ~55% of this generation's VMEM (headroom for compiler scratch)."""
    budget = int(0.55 * vmem_cap)
    if n <= 128 or _footprint_bytes(n, n, ch_p) <= budget:
        return n
    t = 128
    while 2 * t < n and _footprint_bytes(2 * t, n, ch_p) <= budget:
        t *= 2
    return t


def contextual_loss(inputs, targets, h=0.1, tile_i=None):
    """inputs, targets: (bs, ch, H, W) float32 NCHW (same as the PyTorch module)."""
    bs, ch, H, W = inputs.shape
    N = H * W

    # Natural (bs, ch, N) layout for both tensors; zero-pad channels to a multiple
    # of 8 sublanes.  Zero channels are exact: mean 0, add 0 to norms and dots.
    ch_p = ((ch + 7) // 8) * 8
    a = inputs.reshape(bs, ch, N).astype(jnp.float32)
    b = targets.reshape(bs, ch, N).astype(jnp.float32)
    if ch_p != ch:
        pad = ((0, 0), (0, ch_p - ch), (0, 0))
        a = jnp.pad(a, pad)
        b = jnp.pad(b, pad)
    mu = jnp.mean(b, axis=(0, 2)).reshape(ch_p, 1)        # per-channel mean of targets

    vmem_cap = _vmem_capacity_bytes()
    if tile_i is None:
        tile_i = _pick_tile_i(N, ch_p, vmem_cap)
    else:
        tile_i = min(int(tile_i), N)
        if tile_i != N:
            tile_i = max(128, (tile_i // 128) * 128)
    n_i = pl.cdiv(N, tile_i)
    mask_tail = (N % tile_i) != 0

    est = _footprint_bytes(tile_i, N, ch_p)
    vmem_limit = int(min(max(2 * est, 32 << 20), int(0.85 * vmem_cap)))

    kernel = functools.partial(_cx_kernel, h=float(h), n_valid=N,
                               tile_i=tile_i, mask_tail=mask_tail)
    out = pl.pallas_call(
        kernel,
        out_shape=jax.ShapeDtypeStruct((bs, 8, 128), jnp.float32),
        grid=(bs, n_i),
        in_specs=[
            pl.BlockSpec((ch_p, 1), lambda bi, ii: (0, 0)),               # mu
            pl.BlockSpec((1, ch_p, tile_i), lambda bi, ii: (bi, 0, ii)),  # A i-tile
            pl.BlockSpec(memory_space=pl.ANY),                            # B raw HBM
        ],
        out_specs=pl.BlockSpec((1, 8, 128), lambda bi, ii: (bi, 0, 0)),
        scratch_shapes=[
            pltpu.VMEM((ch_p, N), jnp.float32),   # normalized-B (hoisted, 1 copy)
            pltpu.VMEM((1, N), jnp.float32),      # col-max accumulator
        ],
        compiler_params=pltpu.CompilerParams(
            dimension_semantics=("parallel", "arbitrary"),
            vmem_limit_bytes=vmem_limit,
        ),
    )(mu, a, b)

    CX = out[:, 0, 0]                                     # (bs,)
    return jnp.mean(-jnp.log(CX))


def contextual_loss_ref(inputs, targets, h=0.1):
    """Pure-JAX reference mirroring the PyTorch module exactly."""
    bs, ch = inputs.shape[:2]
    mu_y = jnp.mean(targets, axis=(0, 2, 3)).reshape(1, ch, 1, 1)
    x = inputs - mu_y
    y = targets - mu_y
    x = x / jnp.sqrt(jnp.sum(x * x, axis=1, keepdims=True))
    y = y / jnp.sqrt(jnp.sum(y * y, axis=1, keepdims=True))
    x = x.reshape(bs, ch, -1)
    y = y.reshape(bs, ch, -1)
    cos = jnp.einsum('bci,bcj->bij', x, y)
    d = 1.0 - cos
    d_t = d / (jnp.min(d, axis=2, keepdims=True) + 1e-5)
    w = jnp.exp((1.0 - d_t) / h)
    cx = w / (jnp.sum(w, axis=2, keepdims=True) + 1e-8)
    CX = jnp.mean(jnp.max(cx, axis=1), axis=1)
    return jnp.mean(-jnp.log(CX))


if __name__ == "__main__":
    key = jax.random.PRNGKey(0)
    k1, k2, k3, k4 = jax.random.split(key, 4)

    # Case 1: aligned shapes (bs=2, ch=4, 16x16 -> N=256), forced tile_i=128 so the
    # cross-tile col-max accumulator and the hoisted-B path are exercised (2 i-tiles).
    x1 = jax.random.normal(k1, (2, 4, 16, 16), dtype=jnp.float32)
    y1 = jax.random.normal(k2, (2, 4, 16, 16), dtype=jnp.float32)
    out1 = jax.block_until_ready(contextual_loss(x1, y1, h=0.1, tile_i=128))
    ref1 = jax.block_until_ready(contextual_loss_ref(x1, y1, h=0.1))
    np.testing.assert_allclose(np.asarray(out1), np.asarray(ref1),
                               rtol=1e-4, atol=1e-4)

    # Case 2: non-128-multiple N (20x20 -> N=400) with a masked tail i-tile,
    # odd channel count (ch=5 -> padded to 8) and bs=1.
    x2 = jax.random.normal(k3, (1, 5, 20, 20), dtype=jnp.float32)
    y2 = jax.random.normal(k4, (1, 5, 20, 20), dtype=jnp.float32)
    out2 = jax.block_until_ready(contextual_loss(x2, y2, h=0.1, tile_i=128))
    ref2 = jax.block_until_ready(contextual_loss_ref(x2, y2, h=0.1))
    np.testing.assert_allclose(np.asarray(out2), np.asarray(ref2),
                               rtol=1e-4, atol=1e-4)

    print("KERNEL_OK")
</pallas_src>

<mosaic_0001>
module attributes {stable_mosaic.version = 11 : i64} {
  func.func @_cx_kernel(%arg0: i32, %arg1: i32, %arg2: memref<8x1xf32, #tpu.memory_space<vmem>>, %arg3: memref<1x8x128xf32, #tpu.memory_space<vmem>>, %arg4: memref<2x8x256xf32, #tpu.memory_space<any>>, %arg5: memref<1x8x128xf32, #tpu.memory_space<vmem>>, %arg6: memref<8x256xf32, #tpu.memory_space<vmem>>, %arg7: memref<1x256xf32, #tpu.memory_space<vmem>>) attributes {dimension_semantics = [#tpu.dimension_semantics<parallel>, #tpu.dimension_semantics<arbitrary>], iteration_bounds = array<i64: 2, 2>, scalar_prefetch = 0 : i64, scratch_operands = 2 : i64, tpu.core_type = #tpu.core_type<tc>, window_params = [{pipeline_mode = #tpu.pipeline_mode<synchronous>, transform_indices = @transform_0, window_bounds = array<i64: 8, 1>}, {transform_indices = @transform_1, window_bounds = array<i64: 1, 8, 128>}, {}, {transform_indices = @transform_3, window_bounds = array<i64: 1, 8, 128>}]} {
    %c0 = arith.constant 0 : index
    %c0_0 = arith.constant 0 : index
    %0 = vector.load %arg2[%c0, %c0_0] : memref<8x1xf32, #tpu.memory_space<vmem>>, vector<8x1xf32>
    %c0_i32 = arith.constant 0 : i32
    %1 = arith.cmpi eq, %arg1, %c0_i32 : i32
    %2 = arith.extui %1 : i1 to i32
    %c0_i32_1 = arith.constant 0 : i32
    %3 = arith.cmpi ne, %2, %c0_i32_1 : i32
    scf.if %3 {
      "tpu.region"() ({
        %59 = tpu.sem_alloc : memref<!tpu.dma_semaphore, #tpu.memory_space<semaphore_mem>>
        %c0_i32_31 = arith.constant 0 : i32
        %c0_i32_32 = arith.constant 0 : i32
        %60 = tpu.memref_slice %arg4[%arg0, %c0_i32_31, %c0_i32_32] : memref<2x8x256xf32, #tpu.memory_space<any>> -> memref<1x8x256xf32, #tpu.memory_space<any>>
        %61 = tpu.memref_squeeze %60 : memref<1x8x256xf32, #tpu.memory_space<any>> -> memref<8x256xf32, #tpu.memory_space<any>>
        tpu.enqueue_dma source(%61 : memref<8x256xf32, #tpu.memory_space<any>>) target(%arg6 : memref<8x256xf32, #tpu.memory_space<vmem>>) target_semaphore(%59 : memref<!tpu.dma_semaphore, #tpu.memory_space<semaphore_mem>>)
        %c0_i32_33 = arith.constant 0 : i32
        %c0_i32_34 = arith.constant 0 : i32
        %62 = tpu.memref_slice %arg4[%arg0, %c0_i32_33, %c0_i32_34] : memref<2x8x256xf32, #tpu.memory_space<any>> -> memref<1x8x256xf32, #tpu.memory_space<any>>
        %63 = tpu.memref_squeeze %62 : memref<1x8x256xf32, #tpu.memory_space<any>> -> memref<8x256xf32, #tpu.memory_space<any>>
        tpu.wait_dma2 semaphore(%59 : memref<!tpu.dma_semaphore, #tpu.memory_space<semaphore_mem>>) src(%63 : memref<8x256xf32, #tpu.memory_space<any>>) dst(%arg6 : memref<8x256xf32, #tpu.memory_space<vmem>>)
        tpu.yield
      }) : () -> ()
      %c0_23 = arith.constant 0 : index
      %c0_24 = arith.constant 0 : index
      %47 = vector.load %arg6[%c0_23, %c0_24] : memref<8x256xf32, #tpu.memory_space<vmem>>, vector<8x256xf32>
      %48 = vector.broadcast %0 : vector<8x1xf32> to vector<8x256xf32>
      %49 = arith.subf %47, %48 : vector<8x256xf32>
      %50 = arith.mulf %49, %49 : vector<8x256xf32>
      %cst_25 = arith.constant dense<0.000000e+00> : vector<256xf32>
      %51 = vector.multi_reduction <add>, %50, %cst_25 [0] : vector<8x256xf32> to vector<256xf32>
      %52 = vector.shape_cast %51 : vector<256xf32> to vector<1x256xf32>
      %53 = math.rsqrt %52 : vector<1x256xf32>
      %54 = vector.broadcast %53 : vector<1x256xf32> to vector<8x256xf32>
      %55 = arith.mulf %49, %54 : vector<8x256xf32>
      %c0_26 = arith.constant 0 : index
      %c0_27 = arith.constant 0 : index
      %56 = vector.load %arg6[%c0_26, %c0_27] : memref<8x256xf32, #tpu.memory_space<vmem>>, vector<8x256xf32>
      tpu.vector_store %arg6[%c0_26, %c0_27], %55 {strides = array<i32>} : memref<8x256xf32, #tpu.memory_space<vmem>>, vector<8x256xf32>,
      %cst_28 = arith.constant 0.000000e+00 : f32
      %57 = vector.broadcast %cst_28 : f32 to vector<1x256xf32>
      %c0_29 = arith.constant 0 : index
      %c0_30 = arith.constant 0 : index
      %58 = vector.load %arg7[%c0_29, %c0_30] : memref<1x256xf32, #tpu.memory_space<vmem>>, vector<1x256xf32>
      tpu.vector_store %arg7[%c0_29, %c0_30], %57 {strides = array<i32>} : memref<1x256xf32, #tpu.memory_space<vmem>>, vector<1x256xf32>,
    } else {
    }
    %c0_2 = arith.constant 0 : index
    %c0_3 = arith.constant 0 : index
    %c0_4 = arith.constant 0 : index
    %4 = vector.load %arg3[%c0_2, %c0_3, %c0_4] : memref<1x8x128xf32, #tpu.memory_space<vmem>>, vector<1x8x128xf32>
    %5 = vector.shape_cast %4 : vector<1x8x128xf32> to vector<8x128xf32>
    %6 = vector.broadcast %0 : vector<8x1xf32> to vector<8x128xf32>
    %7 = arith.subf %5, %6 : vector<8x128xf32>
    %8 = arith.mulf %7, %7 : vector<8x128xf32>
    %cst = arith.constant dense<0.000000e+00> : vector<128xf32>
    %9 = vector.multi_reduction <add>, %8, %cst [0] : vector<8x128xf32> to vector<128xf32>
    %10 = vector.shape_cast %9 : vector<128xf32> to vector<1x128xf32>
    %11 = math.rsqrt %10 : vector<1x128xf32>
    %12 = vector.broadcast %11 : vector<1x128xf32> to vector<8x128xf32>
    %13 = arith.mulf %7, %12 : vector<8x128xf32>
    %c0_5 = arith.constant 0 : index
    %c0_6 = arith.constant 0 : index
    %14 = vector.load %arg6[%c0_5, %c0_6] : memref<8x256xf32, #tpu.memory_space<vmem>>, vector<8x256xf32>
    %cst_7 = arith.constant dense<0.000000e+00> : vector<128x256xf32>
    %15 = tpu.matmul %13, %14, %cst_7 {dimension_numbers = #tpu.dot_dimension_numbers<[0], [0], [1], [1], [0, 1, 1, 1], [], []>} : vector<8x128xf32>, vector<8x256xf32>, vector<128x256xf32> -> vector<128x256xf32>
    %cst_8 = arith.constant 1.000000e+00 : f32
    %16 = vector.broadcast %cst_8 : f32 to vector<128x256xf32>
    %17 = arith.subf %16, %15 : vector<128x256xf32>
    %cst_9 = arith.constant dense<0x7F800000> : vector<128xf32>
    %18 = vector.multi_reduction <minimumf>, %17, %cst_9 [1] : vector<128x256xf32> to vector<128xf32>
    %19 = vector.shape_cast %18 : vector<128xf32> to vector<128x1xf32>
    %cst_10 = arith.constant 9.99999974E-6 : f32
    %20 = vector.broadcast %cst_10 : f32 to vector<128x1xf32>
    %21 = arith.addf %19, %20 : vector<128x1xf32>
    %cst_11 = arith.constant 1.000000e-01 : f32
    %22 = vector.broadcast %cst_11 : f32 to vector<128x1xf32>
    %23 = arith.mulf %21, %22 : vector<128x1xf32>
    %cst_12 = arith.constant 1.000000e+00 : f32
    %24 = vector.broadcast %cst_12 : f32 to vector<128x1xf32>
    %25 = arith.divf %24, %23 : vector<128x1xf32>
    %26 = vector.broadcast %25 : vector<128x1xf32> to vector<128x256xf32>
    %27 = arith.mulf %17, %26 : vector<128x256xf32>
    %cst_13 = arith.constant 1.000000e+01 : f32
    %28 = vector.broadcast %cst_13 : f32 to vector<128x256xf32>
    %29 = arith.subf %28, %27 : vector<128x256xf32>
    %30 = math.exp %29 : vector<128x256xf32>
    %cst_14 = arith.constant dense<0.000000e+00> : vector<128xf32>
    %31 = vector.multi_reduction <add>, %30, %cst_14 [1] : vector<128x256xf32> to vector<128xf32>
    %32 = vector.shape_cast %31 : vector<128xf32> to vector<128x1xf32>
    %cst_15 = arith.constant 9.99999993E-9 : f32
    %33 = vector.broadcast %cst_15 : f32 to vector<128x1xf32>
    %34 = arith.addf %32, %33 : vector<128x1xf32>
    %cst_16 = arith.constant 1.000000e+00 : f32
    %35 = vector.broadcast %cst_16 : f32 to vector<128x1xf32>
    %36 = arith.divf %35, %34 : vector<128x1xf32>
    %37 = vector.broadcast %36 : vector<128x1xf32> to vector<128x256xf32>
    %38 = arith.mulf %30, %37 : vector<128x256xf32>
    %c0_17 = arith.constant 0 : index
    %c0_18 = arith.constant 0 : index
    %39 = vector.load %arg7[%c0_17, %c0_18] : memref<1x256xf32, #tpu.memory_space<vmem>>, vector<1x256xf32>
    %cst_19 = arith.constant dense<0xFF800000> : vector<256xf32>
    %40 = vector.multi_reduction <maximumf>, %38, %cst_19 [0] : vector<128x256xf32> to vector<256xf32>
    %41 = vector.shape_cast %40 : vector<256xf32> to vector<1x256xf32>
    %42 = arith.maximumf %39, %41 : vector<1x256xf32>
    %c0_20 = arith.constant 0 : index
    %c0_21 = arith.constant 0 : index
    %43 = vector.load %arg7[%c0_20, %c0_21] : memref<1x256xf32, #tpu.memory_space<vmem>>, vector<1x256xf32>
    tpu.vector_store %arg7[%c0_20, %c0_21], %42 {strides = array<i32>} : memref<1x256xf32, #tpu.memory_space<vmem>>, vector<1x256xf32>,
    %c1_i32 = arith.constant 1 : i32
    %44 = arith.cmpi eq, %arg1, %c1_i32 : i32
    %45 = arith.extui %44 : i1 to i32
    %c0_i32_22 = arith.constant 0 : i32
    %46 = arith.cmpi ne, %45, %c0_i32_22 : i32
    scf.if %46 {
      %c0_23 = arith.constant 0 : index
      %c0_24 = arith.constant 0 : index
      %47 = vector.load %arg7[%c0_23, %c0_24] : memref<1x256xf32, #tpu.memory_space<vmem>>, vector<1x256xf32>
      %48 = vector.shape_cast %47 : vector<1x256xf32> to vector<1x1x256xf32>
      %cst_25 = arith.constant dense<0.000000e+00> : vector<1xf32>
      %49 = vector.multi_reduction <add>, %48, %cst_25 [1, 2] : vector<1x1x256xf32> to vector<1xf32>
      %50 = vector.shape_cast %49 : vector<1xf32> to vector<1x1x1xf32>
      %51 = vector.extract %50[0, 0, 0] : f32 from vector<1x1x1xf32>
      %cst_26 = arith.constant 2.560000e+02 : f32
      %52 = arith.divf %51, %cst_26 : f32
      %53 = vector.broadcast %52 : f32 to vector<1x8x128xf32>
      %c0_27 = arith.constant 0 : index
      %c0_28 = arith.constant 0 : index
      %c0_29 = arith.constant 0 : index
      %54 = vector.load %arg5[%c0_27, %c0_28, %c0_29] : memref<1x8x128xf32, #tpu.memory_space<vmem>>, vector<1x8x128xf32>
      tpu.vector_store %arg5[%c0_27, %c0_28, %c0_29], %53 {strides = array<i32>} : memref<1x8x128xf32, #tpu.memory_space<vmem>>, vector<1x8x128xf32>,
    } else {
    }
    return
  }
  func.func @transform_0(%arg0: i32, %arg1: i32) -> (i32, i32) {
    %c0_i32 = arith.constant 0 : i32
    %c0_i32_0 = arith.constant 0 : i32
    %c0_i32_1 = arith.constant 0 : i32
    return %c0_i32, %c0_i32_0 : i32, i32
  }
  func.func @transform_1(%arg0: i32, %arg1: i32) -> (i32, i32, i32) {
    %c0_i32 = arith.constant 0 : i32
    %c0_i32_0 = arith.constant 0 : i32
    return %arg0, %c0_i32, %arg1 : i32, i32, i32
  }
  func.func @transform_3(%arg0: i32, %arg1: i32) -> (i32, i32, i32) {
    %c0_i32 = arith.constant 0 : i32
    %c0_i32_0 = arith.constant 0 : i32
    %c0_i32_1 = arith.constant 0 : i32
    return %arg0, %c0_i32, %c0_i32_0 : i32, i32, i32
  }
}

</mosaic_0001>

<llo_original>
// kernel: tpu_custom_call.1
$region0: #{tpu_custom_call.1}
  #allocation0 [shape = 'u32[]', space=smem, size = 0x4, offset = 0x4, fixed_abs, tag = 'smem constant byte address 0x4 - core index']
  #allocation1 [shape = 'u32[72,128]{1,0:T(1,128)}', space=vmem, size = 0x9000, scoped, tag = 'internal scratch']
  #allocation2 [shape = 'f32[8,256]{1,0:T(8,128)}', space=vmem, size = 0x2000, scoped, tag = 'scratch operand']
  #allocation3 [shape = 'f32[1,256]{1,0:T(1,128)}', space=vmem, size = 0x400, scoped, tag = 'scratch operand']
  #allocation9 [shape = 's32[]', space=sflag, size = 0x4, offset = 0, fixed_abs, tag = 'sflag constant byte address 0x0 - dummy sync flag']
  #allocation10 [shape = 's32[]', space=sflag, size = 0x4, offset = 0, fixed_abs, tag = 'sflag constant byte address 0x0 - dummy sync flag']
  #allocation11 [shape = 'u32[]', space=smem, size = 0x4, offset = 0x44, fixed_abs, tag = 'smem constant byte address 0x44 - assertion arg 0']
  #allocation12 [shape = 'u32[]', space=smem, size = 0x4, offset = 0x48, fixed_abs, tag = 'smem constant byte address 0x48 - assertion arg 1']
  %s0 = inlined_call_operand.vmem [shape: f32[8,1], index: 0, kind: input, shape index: {}]
  %s1 = inlined_call_operand.hbm [shape: f32[2,8,256], index: 1, kind: input, shape index: {}]
  %s2 = inlined_call_operand.hbm [shape: f32[2,8,256], index: 2, kind: input, shape index: {}]
  %s3 = inlined_call_operand.hbm [shape: f32[2,8,128], index: 3, kind: output, shape index: {}]
  %s4 = sld [smem:[#allocation0]]
  $region58: #{tpu_custom_call.1} parent=0
    _
  %s6 = ssub.s32 1, %s4
  %s7 = scalar_select 0, %s6, %s4
  $region1: #{tpu_custom_call.1} parent=0
    #allocation4 [shape = 'u8[8192]{0}', space=vmem, size = 0x2000, scoped, tag = 'input window, operand 1']
    #allocation5 [shape = 's32[2]{0}', space=sflag, size = 0x8, scoped, tag = 'scoped memory for tpu_custom_call.1']
    #allocation6 [shape = 's32[2]{0}', space=sflag, size = 0x8, scoped, tag = 'scoped memory for tpu_custom_call.1']
    #allocation7 [shape = 'u8[8192]{0}', space=vmem, size = 0x2000, scoped, tag = 'output window, operand 0']
    %8 = vsyncpa [#allocation5], 0
    %s9 = scalar_lea.sflag [#allocation5], 1
    %10 = vsyncpa %s9, 0
    %11 = vsyncpa [#allocation6], 0
    %s12 = scalar_lea.sflag [#allocation6], 1
    %13 = vsyncpa %s12, 0
    loop: start=0, step=1, limit=6
    $region2: #{tpu_custom_call.1} parent=1 // loop_pre_header
      _
    $region3: #{tpu_custom_call.1} parent=1 // loop_header
      %s15 = sphi 0, %s19
      %p16 = scmp.ge.s32.totalorder %s15, 6
      %s22 = sphi 0, %s34
      %s23 = sphi 0, %s30
      %s24 = sphi 0, %s22
      %s25 = sphi 0, %s23
      %s26 = sphi 0, %s24
      %s27 = sphi 0, %s25
      %s35 = sphi 0, %s35
      %s37 = sphi 0, %s35
      %s38 = sphi 0, %s37
      %s52 = sphi 0, %s38
      %s60 = sphi 0, %s62
      %s63 = sphi 0, %s60
      %s64 = sphi 0, %s63
      %s80 = sphi 0, %s64
      %s86 = sphi 0, %s88
      %s89 = sphi 0, %s86
      %s90 = sphi 0, %s89
      %s106 = sphi 0, %s90
    $region4: #{tpu_custom_call.1} parent=1 // loop_header_branch
      %18 = sbr.rel (%p16) target = $region8
    $region5: #{tpu_custom_call.1} parent=1 // loop_body
      %s20 = ssub.s32 %s15, 1
      %s21 = ssub.s32 %s15, 2
      %s28 = sadd.s32 1, %s23
      %p29 = scmp.ge.s32.totalorder %s28, 2
      %s30 = scalar_select %p29, 0, %s28
      %s31 = sadd.s32 1, %s22
      %s32 = scalar_select %p29, %s31, %s22
      %p33 = scmp.ge.s32.totalorder %s32, 2
      %s34 = scalar_select %p33, 0, %s32
      %s36 = sadd.s32 %s35, 1
      %p39 = scmp.eq.s32.totalorder %s15, 3
      %p40 = scmp.ne.s32.totalorder %s35, %s37
      %p41 = scmp.eq.s32.totalorder %s15, 0
      %p42 = por %p40, %p41
      %p43 = scmp.ne.s32.totalorder %s35, %s37
      %p44 = scmp.eq.s32.totalorder %s20, 3
      %p45 = por %p43, %p44
      %p46 = scmp.ne.s32.totalorder %s37, %s38
      %p47 = scmp.eq.s32.totalorder %s20, 0
      %p48 = por %p46, %p47
      %p49 = scmp.ne.s32.totalorder %s37, %s38
      %p50 = scmp.eq.s32.totalorder %s21, 3
      %p51 = por %p49, %p50
      %p53 = scmp.ne.s32.totalorder %s38, %s52
      %p54 = scmp.eq.s32.totalorder %s21, 0
      %p55 = por %p53, %p54
      %s56 = ssub.s32 %s22, %s34
      %s57 = ssub.s32 %s23, %s30
      %s58 = sor.u32 %s56, %s57
      %p59 = scmp.eq.s32.totalorder %s58, 0
      %s61 = sadd.s32 %s60, 1
      %s62 = scalar_select %p59, %s60, %s61
      %p65 = pneg %p59
      %p66 = scmp.eq.s32.totalorder %s15, 3
      %p67 = por %p65, %p66
      %p68 = scmp.ne.s32.totalorder %s60, %s63
      %p69 = scmp.eq.s32.totalorder %s15, 0
      %p70 = por %p68, %p69
      %p71 = scmp.ne.s32.totalorder %s60, %s63
      %p72 = scmp.eq.s32.totalorder %s20, 3
      %p73 = por %p71, %p72
      %p74 = scmp.ne.s32.totalorder %s63, %s64
      %p75 = scmp.eq.s32.totalorder %s20, 0
      %p76 = por %p74, %p75
      %p77 = scmp.ne.s32.totalorder %s63, %s64
      %p78 = scmp.eq.s32.totalorder %s21, 3
      %p79 = por %p77, %p78
      %p81 = scmp.ne.s32.totalorder %s64, %s80
      %p82 = scmp.eq.s32.totalorder %s21, 0
      %p83 = por %p81, %p82
      %s84 = ssub.s32 %s22, %s34
      %p85 = scmp.eq.s32.totalorder %s84, 0
      %s87 = sadd.s32 %s86, 1
      %s88 = scalar_select %p85, %s86, %s87
      %p91 = pneg %p85
      %p92 = scmp.eq.s32.totalorder %s15, 3
      %p93 = por %p91, %p92
      %p94 = scmp.ne.s32.totalorder %s86, %s89
      %p95 = scmp.eq.s32.totalorder %s15, 0
      %p96 = por %p94, %p95
      %p97 = scmp.ne.s32.totalorder %s86, %s89
      %p98 = scmp.eq.s32.totalorder %s20, 3
      %p99 = por %p97, %p98
      %p100 = scmp.ne.s32.totalorder %s89, %s90
      %p101 = scmp.eq.s32.totalorder %s20, 0
      %p102 = por %p100, %p101
      %p103 = scmp.ne.s32.totalorder %s89, %s90
      %p104 = scmp.eq.s32.totalorder %s21, 3
      %p105 = por %p103, %p104
      %p107 = scmp.ne.s32.totalorder %s90, %s106
      %p108 = scmp.eq.s32.totalorder %s21, 0
      %p109 = por %p107, %p108
      %p110 = scmp.le.s32.totalorder 1, %s15
      %p111 = scmp.lt.s32.totalorder %s15, 5
      %p112 = pnand %p110, %p111
      %p113 = pneg %p112
      // Predicated region
      $region9: #{tpu_custom_call.1} parent=5 // pred_check
        _
      $region10: #{tpu_custom_call.1} parent=5 // pred_check_branch
        %115 = sbr.rel (%p112) target = $region12
      $region11: #{tpu_custom_call.1} parent=5 // pred_region
        %s116 = ssub.s32 %s15, 1
        // Predicated region
        $region13: #{tpu_custom_call.1} parent=11 // pred_check
          %p117 = pneg %p48
        $region14: #{tpu_custom_call.1} parent=11 // pred_check_branch
          %119 = sbr.rel (%p117) target = $region16
        $region15: #{tpu_custom_call.1} parent=11 // pred_region
          _
        $region16: #{tpu_custom_call.1} parent=11 // pred_fallthru
          _
      $region12: #{tpu_custom_call.1} parent=5 // pred_fallthru
        _
      %p120 = scmp.lt.s32.totalorder %s15, 4
      // Predicated region
      $region17: #{tpu_custom_call.1} parent=5 // pred_check
        %p121 = pneg %p120
      $region18: #{tpu_custom_call.1} parent=5 // pred_check_branch
        %123 = sbr.rel (%p121) target = $region20
      $region19: #{tpu_custom_call.1} parent=5 // pred_region
        // Predicated region
        $region21: #{tpu_custom_call.1} parent=19 // pred_check
          %p124 = pneg %p70
        $region22: #{tpu_custom_call.1} parent=19 // pred_check_branch
          %126 = sbr.rel (%p124) target = $region24
        $region23: #{tpu_custom_call.1} parent=19 // pred_region
          %s127 = sand.u32 %s60, 1
          %s128 = scalar_lea.sflag [#allocation5], %s127
          %s129 = sand.u32 %s60, 1
          %s130 = smul.addr %s129, 8
          %s131 = scalar_lea.vmem [#allocation4], %s130
          %133 = vsyncadd %s128, 0
          %s134 = smul.addr %s22, 2
          %s135 = sadd.s32 %s23, %s134
          %s136 = smul.addr %s135, 8
          %s137 = scalar_lea.hbm %s1, %s136
          %s139 = sshll.u32 %s137, 4
          %s140 = int_to_ptr.hbm [resolvable:$true] %s139
          %s141 = sshll.u32 %s131, 4
          %s142 = int_to_ptr.vmem [resolvable:$true] %s141
          %144 = dma.hbm_to_vmem [thread:$0]  %s140, 128, %s142, %s128
        $region24: #{tpu_custom_call.1} parent=19 // pred_fallthru
          _
      $region20: #{tpu_custom_call.1} parent=5 // pred_fallthru
        _
      %p145 = scmp.le.s32.totalorder 1, %s15
      %p146 = scmp.lt.s32.totalorder %s15, 5
      %p147 = pnand %p145, %p146
      %p148 = pneg %p147
      // Predicated region
      $region25: #{tpu_custom_call.1} parent=5 // pred_check
        _
      $region26: #{tpu_custom_call.1} parent=5 // pred_check_branch
        %150 = sbr.rel (%p147) target = $region28
      $region27: #{tpu_custom_call.1} parent=5 // pred_region
        %s151 = ssub.s32 %s15, 1
        %s152 = sand.u32 %s63, 1
        %s153 = scalar_lea.sflag [#allocation5], %s152
        %s154 = sand.u32 %s63, 1
        %s155 = smul.addr %s154, 8
        %s156 = scalar_lea.vmem [#allocation4], %s155
        // Predicated region
        $region29: #{tpu_custom_call.1} parent=27 // pred_check
          %p157 = pneg %p76
        $region30: #{tpu_custom_call.1} parent=27 // pred_check_branch
          %159 = sbr.rel (%p157) target = $region32
        $region31: #{tpu_custom_call.1} parent=27 // pred_region
          %161 = dma.done %s153, 128
        $region32: #{tpu_custom_call.1} parent=27 // pred_fallthru
          _
        %p162 = pneg %p48
        %p163 = pneg %p45
        %s164 = sand.u32 %s63, 1
        %s165 = scalar_lea.sflag [#allocation5], %s164
        %s166 = sand.u32 %s63, 1
        %s167 = smul.addr %s166, 8
        %s168 = scalar_lea.vmem [#allocation4], %s167
        %p169 = pneg %p76
        %p170 = pneg %p73
        %p171 = pneg %p102
        %p172 = pneg %p99
        %s173 = sand.u32 %s89, 1
        %s174 = scalar_lea.sflag [#allocation6], %s173
        %s175 = sand.u32 %s89, 1
        %s176 = smul.addr %s175, 8
        %s177 = scalar_lea.vmem [#allocation7], %s176
        %v178 = vld [vmem:[%s0] sm:$0xff]
        %p179 = scmp.eq.s32.totalorder %s25, 0
        // Predicated region
        $region33: #{tpu_custom_call.1} parent=27 // pred_check
          %p180 = pneg %p179
        $region34: #{tpu_custom_call.1} parent=27 // pred_check_branch
          %182 = sbr.rel (%p180) target = $region36
        $region35: #{tpu_custom_call.1} parent=27 // pred_region
          $region37: #{tpu_custom_call.1} parent=35
            #allocation8 [shape = 's32[1]{0}', space=sflag, size = 0x4, scoped, tag = 'scoped memory for tpu_custom_call.1']
            %s183 = smul.u32 %s24, 2
            %s184 = smul.addr %s183, 8
            %s185 = scalar_lea.hbm %s2, %s184
            // Predicated region
            $region38: #{tpu_custom_call.1} parent=37 // pred_check
              _
            $region39: #{tpu_custom_call.1} parent=37 // pred_check_branch
              %187 = sbr.rel target = $region41
            $region40: #{tpu_custom_call.1} parent=37 // pred_region
              %188 = sst [smem:[#allocation11]] [#allocation10]
              %189 = sst [smem:[#allocation12]] [#allocation9]
            $region41: #{tpu_custom_call.1} parent=37 // pred_fallthru
              _
            %191 = shalt.err (0)
            %s193 = sshll.u32 %s185, 4
            %s194 = int_to_ptr.hbm [resolvable:$true] %s193
            %s195 = sshll.u32 [#allocation2], 4
            %s196 = int_to_ptr.vmem [resolvable:$true] %s195
            %198 = dma.hbm_to_vmem [thread:$0]  %s194, 256, %s196, [#allocation8]
            %s199 = smul.u32 8, 1
            %s200 = smul.u32 %s199, 2
            %s201 = sshll.u32 %s200, 4
            %202 = dma.done [#allocation8], %s201
          %v203 = vld [vmem:[#allocation2] sm:$0xff]
          %v204 = vld [vmem:[#allocation2 + $0x8] sm:$0xff]
          %206 = vset.pattern.permute.xlu0 0
          %207 = vperm.xlu0 %206, %v178
          %v208 = vpop.permute.xlu0 %207
          %v210 = vsub.f32 %v203, %v208
          %v211 = vsub.f32 %v204, %v208
          %v212 = vmul.f32 %v210, %v210
          %v213 = vmul.f32 %v211, %v211
          %v214 = vrot.slane %v212, 4
          %v215 = vadd.f32 %v212, %v214
          %v216 = vrot.slane %v215, 2
          %v217 = vadd.f32 %v215, %v216
          %v218 = vrot.slane %v217, 1
          %v219 = vadd.f32 %v217, %v218
          %v220 = vrot.slane %v213, 4
          %v221 = vadd.f32 %v213, %v220
          %v222 = vrot.slane %v221, 2
          %v223 = vadd.f32 %v221, %v222
          %v224 = vrot.slane %v223, 1
          %v225 = vadd.f32 %v223, %v224
          %v226 = vrsqrt.pop %v219
          %v227 = vmul.f32 %v226, %v219
          %v228 = vmul.f32 %v227, %v226
          %v229 = vmul.f32 0.5, %v228
          %v230 = vsub.f32 1.5, %v229
          %v231 = vmul.f32 %v226, %v230
          %vm232 = vweird.f32 %v219
          %vm233 = vweird.f32 %v226
          %vm234 = vmor %vm232, %vm233
          %v235 = vsel %vm234, %v226, %v231
          %v236 = vrsqrt.pop %v225
          %v237 = vmul.f32 %v236, %v225
          %v238 = vmul.f32 %v237, %v236
          %v239 = vmul.f32 0.5, %v238
          %v240 = vsub.f32 1.5, %v239
          %v241 = vmul.f32 %v236, %v240
          %vm242 = vweird.f32 %v225
          %vm243 = vweird.f32 %v236
          %vm244 = vmor %vm242, %vm243
          %v245 = vsel %vm244, %v236, %v241
          %v246 = vmul.f32 %v210, %v235
          %v247 = vmul.f32 %v211, %v245
          %248 = vst [vmem:[#allocation2] sm:$0xff] %v246
          %249 = vst [vmem:[#allocation2 + $0x8] sm:$0xff] %v247
          %v250 = vlaneseq
          %vm251 = vcmp.ge.s32.totalorder %v250, 0
          %vm252 = vcmp.lt.s32.totalorder %v250, 256
          %vm253 = vmand %vm251, %vm252
          %254 = vst.msk [vmem:[#allocation3] sm:$0x3] %vm253, 0.0
        $region36: #{tpu_custom_call.1} parent=27 // pred_fallthru
          _
        %v255 = vld [vmem:[%s156] sm:$0xff]
        %257 = vset.pattern.permute.xlu0 0
        %258 = vperm.xlu0 %257, %v178
        %v259 = vpop.permute.xlu0 %258
        %v261 = vsub.f32 %v255, %v259
        %v262 = vmul.f32 %v261, %v261
        %v263 = vrot.slane %v262, 4
        %v264 = vadd.f32 %v262, %v263
        %v265 = vrot.slane %v264, 2
        %v266 = vadd.f32 %v264, %v265
        %v267 = vrot.slane %v266, 1
        %v268 = vadd.f32 %v266, %v267
        %v269 = vrsqrt.pop %v268
        %v270 = vmul.f32 %v269, %v268
        %v271 = vmul.f32 %v270, %v269
        %v272 = vmul.f32 0.5, %v271
        %v273 = vsub.f32 1.5, %v272
        %v274 = vmul.f32 %v269, %v273
        %vm275 = vweird.f32 %v268
        %vm276 = vweird.f32 %v269
        %vm277 = vmor %vm275, %vm276
        %v278 = vsel %vm277, %v269, %v274
        %v279 = vmul.f32 %v261, %v278
        %v280 = vld [vmem:[#allocation2] sm:$0xff]
        %v281 = vld [vmem:[#allocation2 + $0x8] sm:$0xff]
        %282 = vxpose.xlu0.b32.start [1/16] %v279, 128
        %283 = vxpose.xlu0.b32.cont [2/16] 0.0, 128
        %284 = vxpose.xlu0.b32.cont [3/16] 0.0, 128
        %285 = vxpose.xlu0.b32.cont [4/16] 0.0, 128
        %286 = vxpose.xlu0.b32.cont [5/16] 0.0, 128
        %287 = vxpose.xlu0.b32.cont [6/16] 0.0, 128
        %288 = vxpose.xlu0.b32.cont [7/16] 0.0, 128
        %289 = vxpose.xlu0.b32.cont [8/16] 0.0, 128
        %290 = vxpose.xlu0.b32.cont [9/16] 0.0, 128
        %291 = vxpose.xlu0.b32.cont [10/16] 0.0, 128
        %292 = vxpose.xlu0.b32.cont [11/16] 0.0, 128
        %293 = vxpose.xlu0.b32.cont [12/16] 0.0, 128
        %294 = vxpose.xlu0.b32.cont [13/16] 0.0, 128
        %295 = vxpose.xlu0.b32.cont [14/16] 0.0, 128
        %296 = vxpose.xlu0.b32.cont [15/16] 0.0, 128
        %297 = vxpose.xlu0.b32.end [16/16] 0.0, 128
        %v298 = vpop.trf.xlu0
        %v299 = vpop.trf.xlu0
        %v300 = vpop.trf.xlu0
        %v301 = vpop.trf.xlu0
        %v302 = vpop.trf.xlu0
        %v303 = vpop.trf.xlu0
        %v304 = vpop.trf.xlu0
        %v305 = vpop.trf.xlu0
        %v306 = vpop.trf.xlu0
        %v307 = vpop.trf.xlu0
        %v308 = vpop.trf.xlu0
        %v309 = vpop.trf.xlu0
        %v310 = vpop.trf.xlu0
        %v311 = vpop.trf.xlu0
        %v312 = vpop.trf.xlu0
        %v313 = vpop.trf.xlu0
        %vm314 = vcmask 64512
        %v316 = vsel %vm314, %v298, 0
        %v319 = vsel %vm314, %v299, 0
        %v322 = vsel %vm314, %v300, 0
        %v325 = vsel %vm314, %v301, 0
        %v328 = vsel %vm314, %v302, 0
        %v331 = vsel %vm314, %v303, 0
        %v334 = vsel %vm314, %v304, 0
        %v337 = vsel %vm314, %v305, 0
        %v340 = vsel %vm314, %v306, 0
        %v343 = vsel %vm314, %v307, 0
        %v346 = vsel %vm314, %v308, 0
        %v349 = vsel %vm314, %v309, 0
        %v352 = vsel %vm314, %v310, 0
        %v355 = vsel %vm314, %v311, 0
        %v358 = vsel %vm314, %v312, 0
        %v361 = vsel %vm314, %v313, 0
        %363 = vmatpush.msra.mxu0 0.0
        %364 = vmatpush.msra.mxu0 0.0
        %365 = vmatpush.msra.mxu0 0.0
        %366 = vmatpush.msra.mxu0 0.0
        %367 = vmatpush.msra.mxu0 0.0
        %368 = vmatpush.msra.mxu0 0.0
        %369 = vmatpush.msra.mxu0 0.0
        %370 = vmatpush.msra.mxu0 0.0
        %371 = vmatpush.msra.mxu0 0.0
        %372 = vmatpush.msra.mxu0 0.0
        %373 = vmatpush.msra.mxu0 0.0
        %374 = vmatpush.msra.mxu0 0.0
        %375 = vmatpush.msra.mxu0 0.0
        %376 = vmatpush.msra.mxu0 0.0
        %377 = vmatpush.msra.mxu0 0.0
        %378 = vmatpush.msra.mxu0 %v280
        %379 = vmatmul.f32.gmra.mxu0 %v316
        %v380 = vpop.f32.mrf.mxu0
        %v381 = vadd.f32 0.0, %v380
        %382 = vmatmul.f32.gmra.mxu0 %v319
        %v383 = vpop.f32.mrf.mxu0
        %v384 = vadd.f32 0.0, %v383
        %385 = vmatmul.f32.gmra.mxu0 %v322
        %v386 = vpop.f32.mrf.mxu0
        %v387 = vadd.f32 0.0, %v386
        %388 = vmatmul.f32.gmra.mxu0 %v325
        %v389 = vpop.f32.mrf.mxu0
        %v390 = vadd.f32 0.0, %v389
        %391 = vmatmul.f32.gmra.mxu0 %v328
        %v392 = vpop.f32.mrf.mxu0
        %v393 = vadd.f32 0.0, %v392
        %394 = vmatmul.f32.gmra.mxu0 %v331
        %v395 = vpop.f32.mrf.mxu0
        %v396 = vadd.f32 0.0, %v395
        %397 = vmatmul.f32.gmra.mxu0 %v334
        %v398 = vpop.f32.mrf.mxu0
        %v399 = vadd.f32 0.0, %v398
        %400 = vmatmul.f32.gmra.mxu0 %v337
        %v401 = vpop.f32.mrf.mxu0
        %v402 = vadd.f32 0.0, %v401
        %403 = vmatmul.f32.gmra.mxu0 %v340
        %v404 = vpop.f32.mrf.mxu0
        %v405 = vadd.f32 0.0, %v404
        %406 = vmatmul.f32.gmra.mxu0 %v343
        %v407 = vpop.f32.mrf.mxu0
        %v408 = vadd.f32 0.0, %v407
        %409 = vmatmul.f32.gmra.mxu0 %v346
        %v410 = vpop.f32.mrf.mxu0
        %v411 = vadd.f32 0.0, %v410
        %412 = vmatmul.f32.gmra.mxu0 %v349
        %v413 = vpop.f32.mrf.mxu0
        %v414 = vadd.f32 0.0, %v413
        %415 = vmatmul.f32.gmra.mxu0 %v352
        %v416 = vpop.f32.mrf.mxu0
        %v417 = vadd.f32 0.0, %v416
        %418 = vmatmul.f32.gmra.mxu0 %v355
        %v419 = vpop.f32.mrf.mxu0
        %v420 = vadd.f32 0.0, %v419
        %421 = vmatmul.f32.gmra.mxu0 %v358
        %v422 = vpop.f32.mrf.mxu0
        %v423 = vadd.f32 0.0, %v422
        %424 = vmatmul.f32.gmra.mxu0 %v361
        %v425 = vpop.f32.mrf.mxu0
        %v426 = vadd.f32 0.0, %v425
        %427 = vdwg.mxu0
        %428 = vmatpush.msra.mxu0 0.0
        %429 = vmatpush.msra.mxu0 0.0
        %430 = vmatpush.msra.mxu0 0.0
        %431 = vmatpush.msra.mxu0 0.0
        %432 = vmatpush.msra.mxu0 0.0
        %433 = vmatpush.msra.mxu0 0.0
        %434 = vmatpush.msra.mxu0 0.0
        %435 = vmatpush.msra.mxu0 0.0
        %436 = vmatpush.msra.mxu0 0.0
        %437 = vmatpush.msra.mxu0 0.0
        %438 = vmatpush.msra.mxu0 0.0
        %439 = vmatpush.msra.mxu0 0.0
        %440 = vmatpush.msra.mxu0 0.0
        %441 = vmatpush.msra.mxu0 0.0
        %442 = vmatpush.msra.mxu0 0.0
        %443 = vmatpush.msra.mxu0 %v281
        %444 = vmatmul.f32.gmra.mxu0 %v316
        %v445 = vpop.f32.mrf.mxu0
        %v446 = vadd.f32 0.0, %v445
        %447 = vmatmul.f32.gmra.mxu0 %v319
        %v448 = vpop.f32.mrf.mxu0
        %v449 = vadd.f32 0.0, %v448
        %450 = vmatmul.f32.gmra.mxu0 %v322
        %v451 = vpop.f32.mrf.mxu0
        %v452 = vadd.f32 0.0, %v451
        %453 = vmatmul.f32.gmra.mxu0 %v325
        %v454 = vpop.f32.mrf.mxu0
        %v455 = vadd.f32 0.0, %v454
        %456 = vmatmul.f32.gmra.mxu0 %v328
        %v457 = vpop.f32.mrf.mxu0
        %v458 = vadd.f32 0.0, %v457
        %459 = vmatmul.f32.gmra.mxu0 %v331
        %v460 = vpop.f32.mrf.mxu0
        %v461 = vadd.f32 0.0, %v460
        %462 = vmatmul.f32.gmra.mxu0 %v334
        %v463 = vpop.f32.mrf.mxu0
        %v464 = vadd.f32 0.0, %v463
        %465 = vmatmul.f32.gmra.mxu0 %v337
        %v466 = vpop.f32.mrf.mxu0
        %v467 = vadd.f32 0.0, %v466
        %468 = vmatmul.f32.gmra.mxu0 %v340
        %v469 = vpop.f32.mrf.mxu0
        %v470 = vadd.f32 0.0, %v469
        %471 = vmatmul.f32.gmra.mxu0 %v343
        %v472 = vpop.f32.mrf.mxu0
        %v473 = vadd.f32 0.0, %v472
        %474 = vmatmul.f32.gmra.mxu0 %v346
        %v475 = vpop.f32.mrf.mxu0
        %v476 = vadd.f32 0.0, %v475
        %477 = vmatmul.f32.gmra.mxu0 %v349
        %v478 = vpop.f32.mrf.mxu0
        %v479 = vadd.f32 0.0, %v478
        %480 = vmatmul.f32.gmra.mxu0 %v352
        %v481 = vpop.f32.mrf.mxu0
        %v482 = vadd.f32 0.0, %v481
        %483 = vmatmul.f32.gmra.mxu0 %v355
        %v484 = vpop.f32.mrf.mxu0
        %v485 = vadd.f32 0.0, %v484
        %486 = vmatmul.f32.gmra.mxu0 %v358
        %v487 = vpop.f32.mrf.mxu0
        %v488 = vadd.f32 0.0, %v487
        %489 = vmatmul.f32.gmra.mxu0 %v361
        %v490 = vpop.f32.mrf.mxu0
        %v491 = vadd.f32 0.0, %v490
        %492 = vdwg.mxu0
        %v493 = vsub.f32 1.0, %v381
        %v494 = vsub.f32 1.0, %v446
        %v495 = vsub.f32 1.0, %v384
        %v496 = vsub.f32 1.0, %v449
        %v497 = vsub.f32 1.0, %v387
        %v498 = vsub.f32 1.0, %v452
        %v499 = vsub.f32 1.0, %v390
        %v500 = vsub.f32 1.0, %v455
        %v501 = vsub.f32 1.0, %v393
        %v502 = vsub.f32 1.0, %v458
        %v503 = vsub.f32 1.0, %v396
        %v504 = vsub.f32 1.0, %v461
        %v505 = vsub.f32 1.0, %v399
        %v506 = vsub.f32 1.0, %v464
        %v507 = vsub.f32 1.0, %v402
        %v508 = vsub.f32 1.0, %v467
        %v509 = vsub.f32 1.0, %v405
        %v510 = vsub.f32 1.0, %v470
        %v511 = vsub.f32 1.0, %v408
        %v512 = vsub.f32 1.0, %v473
        %v513 = vsub.f32 1.0, %v411
        %v514 = vsub.f32 1.0, %v476
        %v515 = vsub.f32 1.0, %v414
        %v516 = vsub.f32 1.0, %v479
        %v517 = vsub.f32 1.0, %v417
        %v518 = vsub.f32 1.0, %v482
        %v519 = vsub.f32 1.0, %v420
        %v520 = vsub.f32 1.0, %v485
        %v521 = vsub.f32 1.0, %v423
        %v522 = vsub.f32 1.0, %v488
        %v523 = vsub.f32 1.0, %v426
        %v524 = vsub.f32 1.0, %v491
        %v525 = vmin.f32 %v493, %v494
        %526 = vmin.xlane.f32.xlu0 %v525
        %v527 = vpop.xlane.xlu0 %526
        %v528 = vmin.f32 %v495, %v496
        %529 = vmin.xlane.f32.xlu0 %v528
        %v530 = vpop.xlane.xlu0 %529
        %v531 = vmin.f32 %v497, %v498
        %532 = vmin.xlane.f32.xlu0 %v531
        %v533 = vpop.xlane.xlu0 %532
        %v534 = vmin.f32 %v499, %v500
        %535 = vmin.xlane.f32.xlu0 %v534
        %v536 = vpop.xlane.xlu0 %535
        %v537 = vmin.f32 %v501, %v502
        %538 = vmin.xlane.f32.xlu0 %v537
        %v539 = vpop.xlane.xlu0 %538
        %v540 = vmin.f32 %v503, %v504
        %541 = vmin.xlane.f32.xlu0 %v540
        %v542 = vpop.xlane.xlu0 %541
        %v543 = vmin.f32 %v505, %v506
        %544 = vmin.xlane.f32.xlu0 %v543
        %v545 = vpop.xlane.xlu0 %544
        %v546 = vmin.f32 %v507, %v508
        %547 = vmin.xlane.f32.xlu0 %v546
        %v548 = vpop.xlane.xlu0 %547
        %v549 = vmin.f32 %v509, %v510
        %550 = vmin.xlane.f32.xlu0 %v549
        %v551 = vpop.xlane.xlu0 %550
        %v552 = vmin.f32 %v511, %v512
        %553 = vmin.xlane.f32.xlu0 %v552
        %v554 = vpop.xlane.xlu0 %553
        %v555 = vmin.f32 %v513, %v514
        %556 = vmin.xlane.f32.xlu0 %v555
        %v557 = vpop.xlane.xlu0 %556
        %v558 = vmin.f32 %v515, %v516
        %559 = vmin.xlane.f32.xlu0 %v558
        %v560 = vpop.xlane.xlu0 %559
        %v561 = vmin.f32 %v517, %v518
        %562 = vmin.xlane.f32.xlu0 %v561
        %v563 = vpop.xlane.xlu0 %562
        %v564 = vmin.f32 %v519, %v520
        %565 = vmin.xlane.f32.xlu0 %v564
        %v566 = vpop.xlane.xlu0 %565
        %v567 = vmin.f32 %v521, %v522
        %568 = vmin.xlane.f32.xlu0 %v567
        %v569 = vpop.xlane.xlu0 %568
        %v570 = vmin.f32 %v523, %v524
        %571 = vmin.xlane.f32.xlu0 %v570
        %v572 = vpop.xlane.xlu0 %571
        %v573 = vadd.f32 %v527, 1e-05
        %v574 = vadd.f32 %v530, 1e-05
        %v575 = vadd.f32 %v533, 1e-05
        %v576 = vadd.f32 %v536, 1e-05
        %v577 = vadd.f32 %v539, 1e-05
        %v578 = vadd.f32 %v542, 1e-05
        %v579 = vadd.f32 %v545, 1e-05
        %v580 = vadd.f32 %v548, 1e-05
        %v581 = vadd.f32 %v551, 1e-05
        %v582 = vadd.f32 %v554, 1e-05
        %v583 = vadd.f32 %v557, 1e-05
        %v584 = vadd.f32 %v560, 1e-05
        %v585 = vadd.f32 %v563, 1e-05
        %v586 = vadd.f32 %v566, 1e-05
        %v587 = vadd.f32 %v569, 1e-05
        %v588 = vadd.f32 %v572, 1e-05
        %v589 = vmul.f32 %v573, 0.1
        %v590 = vmul.f32 %v574, 0.1
        %v591 = vmul.f32 %v575, 0.1
        %v592 = vmul.f32 %v576, 0.1
        %v593 = vmul.f32 %v577, 0.1
        %v594 = vmul.f32 %v578, 0.1
        %v595 = vmul.f32 %v579, 0.1
        %v596 = vmul.f32 %v580, 0.1
        %v597 = vmul.f32 %v581, 0.1
        %v598 = vmul.f32 %v582, 0.1
        %v599 = vmul.f32 %v583, 0.1
        %v600 = vmul.f32 %v584, 0.1
        %v601 = vmul.f32 %v585, 0.1
        %v602 = vmul.f32 %v586, 0.1
        %v603 = vmul.f32 %v587, 0.1
        %v604 = vmul.f32 %v588, 0.1
        %v605 = vrcp.pop %v589
        %v606 = vmul.f32 %v589, %v605
        %v607 = vsub.f32 1.0, %v606
        %v608 = vmul.f32 %v605, %v607
        %v609 = vadd.f32 %v605, %v608
        %vm610 = vweird.f32 %v589
        %vm611 = vweird.f32 %v605
        %vm612 = vmor %vm610, %vm611
        %v613 = vsel %vm612, %v605, %v609
        %v614 = vand.u32 2147483647, %v589
        %vm615 = vcmp.eq.f32.partialorder %v614, 8.507059e+37
        %v616 = vand.u32 %v589, 2147483648
        %v617 = vor.u32 1.1754944e-38, %v616
        %v618 = vsel %vm615, %v617, %v613
        %v619 = vmul.f32 1.0, %v618
        %v620 = vrcp.pop %v590
        %v621 = vmul.f32 %v590, %v620
        %v622 = vsub.f32 1.0, %v621
        %v623 = vmul.f32 %v620, %v622
        %v624 = vadd.f32 %v620, %v623
        %vm625 = vweird.f32 %v590
        %vm626 = vweird.f32 %v620
        %vm627 = vmor %vm625, %vm626
        %v628 = vsel %vm627, %v620, %v624
        %v629 = vand.u32 2147483647, %v590
        %vm630 = vcmp.eq.f32.partialorder %v629, 8.507059e+37
        %v631 = vand.u32 %v590, 2147483648
        %v632 = vor.u32 1.1754944e-38, %v631
        %v633 = vsel %vm630, %v632, %v628
        %v634 = vmul.f32 1.0, %v633
        %v635 = vrcp.pop %v591
        %v636 = vmul.f32 %v591, %v635
        %v637 = vsub.f32 1.0, %v636
        %v638 = vmul.f32 %v635, %v637
        %v639 = vadd.f32 %v635, %v638
        %vm640 = vweird.f32 %v591
        %vm641 = vweird.f32 %v635
        %vm642 = vmor %vm640, %vm641
        %v643 = vsel %vm642, %v635, %v639
        %v644 = vand.u32 2147483647, %v591
        %vm645 = vcmp.eq.f32.partialorder %v644, 8.507059e+37
        %v646 = vand.u32 %v591, 2147483648
        %v647 = vor.u32 1.1754944e-38, %v646
        %v648 = vsel %vm645, %v647, %v643
        %v649 = vmul.f32 1.0, %v648
        %v650 = vrcp.pop %v592
        %v651 = vmul.f32 %v592, %v650
        %v652 = vsub.f32 1.0, %v651
        %v653 = vmul.f32 %v650, %v652
        %v654 = vadd.f32 %v650, %v653
        %vm655 = vweird.f32 %v592
        %vm656 = vweird.f32 %v650
        %vm657 = vmor %vm655, %vm656
        %v658 = vsel %vm657, %v650, %v654
        %v659 = vand.u32 2147483647, %v592
        %vm660 = vcmp.eq.f32.partialorder %v659, 8.507059e+37
        %v661 = vand.u32 %v592, 2147483648
        %v662 = vor.u32 1.1754944e-38, %v661
        %v663 = vsel %vm660, %v662, %v658
        %v664 = vmul.f32 1.0, %v663
        %v665 = vrcp.pop %v593
        %v666 = vmul.f32 %v593, %v665
        %v667 = vsub.f32 1.0, %v666
        %v668 = vmul.f32 %v665, %v667
        %v669 = vadd.f32 %v665, %v668
        %vm670 = vweird.f32 %v593
        %vm671 = vweird.f32 %v665
        %vm672 = vmor %vm670, %vm671
        %v673 = vsel %vm672, %v665, %v669
        %v674 = vand.u32 2147483647, %v593
        %vm675 = vcmp.eq.f32.partialorder %v674, 8.507059e+37
        %v676 = vand.u32 %v593, 2147483648
        %v677 = vor.u32 1.1754944e-38, %v676
        %v678 = vsel %vm675, %v677, %v673
        %v679 = vmul.f32 1.0, %v678
        %v680 = vrcp.pop %v594
        %v681 = vmul.f32 %v594, %v680
        %v682 = vsub.f32 1.0, %v681
        %v683 = vmul.f32 %v680, %v682
        %v684 = vadd.f32 %v680, %v683
        %vm685 = vweird.f32 %v594
        %vm686 = vweird.f32 %v680
        %vm687 = vmor %vm685, %vm686
        %v688 = vsel %vm687, %v680, %v684
        %v689 = vand.u32 2147483647, %v594
        %vm690 = vcmp.eq.f32.partialorder %v689, 8.507059e+37
        %v691 = vand.u32 %v594, 2147483648
        %v692 = vor.u32 1.1754944e-38, %v691
        %v693 = vsel %vm690, %v692, %v688
        %v694 = vmul.f32 1.0, %v693
        %v695 = vrcp.pop %v595
        %v696 = vmul.f32 %v595, %v695
        %v697 = vsub.f32 1.0, %v696
        %v698 = vmul.f32 %v695, %v697
        %v699 = vadd.f32 %v695, %v698
        %vm700 = vweird.f32 %v595
        %vm701 = vweird.f32 %v695
        %vm702 = vmor %vm700, %vm701
        %v703 = vsel %vm702, %v695, %v699
        %v704 = vand.u32 2147483647, %v595
        %vm705 = vcmp.eq.f32.partialorder %v704, 8.507059e+37
        %v706 = vand.u32 %v595, 2147483648
        %v707 = vor.u32 1.1754944e-38, %v706
        %v708 = vsel %vm705, %v707, %v703
        %v709 = vmul.f32 1.0, %v708
        %v710 = vrcp.pop %v596
        %v711 = vmul.f32 %v596, %v710
        %v712 = vsub.f32 1.0, %v711
        %v713 = vmul.f32 %v710, %v712
        %v714 = vadd.f32 %v710, %v713
        %vm715 = vweird.f32 %v596
        %vm716 = vweird.f32 %v710
        %vm717 = vmor %vm715, %vm716
        %v718 = vsel %vm717, %v710, %v714
        %v719 = vand.u32 2147483647, %v596
        %vm720 = vcmp.eq.f32.partialorder %v719, 8.507059e+37
        %v721 = vand.u32 %v596, 2147483648
        %v722 = vor.u32 1.1754944e-38, %v721
        %v723 = vsel %vm720, %v722, %v718
        %v724 = vmul.f32 1.0, %v723
        %v725 = vrcp.pop %v597
        %v726 = vmul.f32 %v597, %v725
        %v727 = vsub.f32 1.0, %v726
        %v728 = vmul.f32 %v725, %v727
        %v729 = vadd.f32 %v725, %v728
        %vm730 = vweird.f32 %v597
        %vm731 = vweird.f32 %v725
        %vm732 = vmor %vm730, %vm731
        %v733 = vsel %vm732, %v725, %v729
        %v734 = vand.u32 2147483647, %v597
        %vm735 = vcmp.eq.f32.partialorder %v734, 8.507059e+37
        %v736 = vand.u32 %v597, 2147483648
        %v737 = vor.u32 1.1754944e-38, %v736
        %v738 = vsel %vm735, %v737, %v733
        %v739 = vmul.f32 1.0, %v738
        %v740 = vrcp.pop %v598
        %v741 = vmul.f32 %v598, %v740
        %v742 = vsub.f32 1.0, %v741
        %v743 = vmul.f32 %v740, %v742
        %v744 = vadd.f32 %v740, %v743
        %vm745 = vweird.f32 %v598
        %vm746 = vweird.f32 %v740
        %vm747 = vmor %vm745, %vm746
        %v748 = vsel %vm747, %v740, %v744
        %v749 = vand.u32 2147483647, %v598
        %vm750 = vcmp.eq.f32.partialorder %v749, 8.507059e+37
        %v751 = vand.u32 %v598, 2147483648
        %v752 = vor.u32 1.1754944e-38, %v751
        %v753 = vsel %vm750, %v752, %v748
        %v754 = vmul.f32 1.0, %v753
        %v755 = vrcp.pop %v599
        %v756 = vmul.f32 %v599, %v755
        %v757 = vsub.f32 1.0, %v756
        %v758 = vmul.f32 %v755, %v757
        %v759 = vadd.f32 %v755, %v758
        %vm760 = vweird.f32 %v599
        %vm761 = vweird.f32 %v755
        %vm762 = vmor %vm760, %vm761
        %v763 = vsel %vm762, %v755, %v759
        %v764 = vand.u32 2147483647, %v599
        %vm765 = vcmp.eq.f32.partialorder %v764, 8.507059e+37
        %v766 = vand.u32 %v599, 2147483648
        %v767 = vor.u32 1.1754944e-38, %v766
        %v768 = vsel %vm765, %v767, %v763
        %v769 = vmul.f32 1.0, %v768
        %v770 = vrcp.pop %v600
        %v771 = vmul.f32 %v600, %v770
        %v772 = vsub.f32 1.0, %v771
        %v773 = vmul.f32 %v770, %v772
        %v774 = vadd.f32 %v770, %v773
        %vm775 = vweird.f32 %v600
        %vm776 = vweird.f32 %v770
        %vm777 = vmor %vm775, %vm776
        %v778 = vsel %vm777, %v770, %v774
        %v779 = vand.u32 2147483647, %v600
        %vm780 = vcmp.eq.f32.partialorder %v779, 8.507059e+37
        %v781 = vand.u32 %v600, 2147483648
        %v782 = vor.u32 1.1754944e-38, %v781
        %v783 = vsel %vm780, %v782, %v778
        %v784 = vmul.f32 1.0, %v783
        %v785 = vrcp.pop %v601
        %v786 = vmul.f32 %v601, %v785
        %v787 = vsub.f32 1.0, %v786
        %v788 = vmul.f32 %v785, %v787
        %v789 = vadd.f32 %v785, %v788
        %vm790 = vweird.f32 %v601
        %vm791 = vweird.f32 %v785
        %vm792 = vmor %vm790, %vm791
        %v793 = vsel %vm792, %v785, %v789
        %v794 = vand.u32 2147483647, %v601
        %vm795 = vcmp.eq.f32.partialorder %v794, 8.507059e+37
        %v796 = vand.u32 %v601, 2147483648
        %v797 = vor.u32 1.1754944e-38, %v796
        %v798 = vsel %vm795, %v797, %v793
        %v799 = vmul.f32 1.0, %v798
        %v800 = vrcp.pop %v602
        %v801 = vmul.f32 %v602, %v800
        %v802 = vsub.f32 1.0, %v801
        %v803 = vmul.f32 %v800, %v802
        %v804 = vadd.f32 %v800, %v803
        %vm805 = vweird.f32 %v602
        %vm806 = vweird.f32 %v800
        %vm807 = vmor %vm805, %vm806
        %v808 = vsel %vm807, %v800, %v804
        %v809 = vand.u32 2147483647, %v602
        %vm810 = vcmp.eq.f32.partialorder %v809, 8.507059e+37
        %v811 = vand.u32 %v602, 2147483648
        %v812 = vor.u32 1.1754944e-38, %v811
        %v813 = vsel %vm810, %v812, %v808
        %v814 = vmul.f32 1.0, %v813
        %v815 = vrcp.pop %v603
        %v816 = vmul.f32 %v603, %v815
        %v817 = vsub.f32 1.0, %v816
        %v818 = vmul.f32 %v815, %v817
        %v819 = vadd.f32 %v815, %v818
        %vm820 = vweird.f32 %v603
        %vm821 = vweird.f32 %v815
        %vm822 = vmor %vm820, %vm821
        %v823 = vsel %vm822, %v815, %v819
        %v824 = vand.u32 2147483647, %v603
        %vm825 = vcmp.eq.f32.partialorder %v824, 8.507059e+37
        %v826 = vand.u32 %v603, 2147483648
        %v827 = vor.u32 1.1754944e-38, %v826
        %v828 = vsel %vm825, %v827, %v823
        %v829 = vmul.f32 1.0, %v828
        %v830 = vrcp.pop %v604
        %v831 = vmul.f32 %v604, %v830
        %v832 = vsub.f32 1.0, %v831
        %v833 = vmul.f32 %v830, %v832
        %v834 = vadd.f32 %v830, %v833
        %vm835 = vweird.f32 %v604
        %vm836 = vweird.f32 %v830
        %vm837 = vmor %vm835, %vm836
        %v838 = vsel %vm837, %v830, %v834
        %v839 = vand.u32 2147483647, %v604
        %vm840 = vcmp.eq.f32.partialorder %v839, 8.507059e+37
        %v841 = vand.u32 %v604, 2147483648
        %v842 = vor.u32 1.1754944e-38, %v841
        %v843 = vsel %vm840, %v842, %v838
        %v844 = vmul.f32 1.0, %v843
        %v845 = vmul.f32 %v493, %v619
        %v846 = vmul.f32 %v494, %v619
        %v847 = vmul.f32 %v495, %v634
        %v848 = vmul.f32 %v496, %v634
        %v849 = vmul.f32 %v497, %v649
        %v850 = vmul.f32 %v498, %v649
        %v851 = vmul.f32 %v499, %v664
        %v852 = vmul.f32 %v500, %v664
        %v853 = vmul.f32 %v501, %v679
        %v854 = vmul.f32 %v502, %v679
        %v855 = vmul.f32 %v503, %v694
        %v856 = vmul.f32 %v504, %v694
        %v857 = vmul.f32 %v505, %v709
        %v858 = vmul.f32 %v506, %v709
        %v859 = vmul.f32 %v507, %v724
        %v860 = vmul.f32 %v508, %v724
        %v861 = vmul.f32 %v509, %v739
        %v862 = vmul.f32 %v510, %v739
        %v863 = vmul.f32 %v511, %v754
        %v864 = vmul.f32 %v512, %v754
        %v865 = vmul.f32 %v513, %v769
        %v866 = vmul.f32 %v514, %v769
        %v867 = vmul.f32 %v515, %v784
        %v868 = vmul.f32 %v516, %v784
        %v869 = vmul.f32 %v517, %v799
        %v870 = vmul.f32 %v518, %v799
        %v871 = vmul.f32 %v519, %v814
        %v872 = vmul.f32 %v520, %v814
        %v873 = vmul.f32 %v521, %v829
        %v874 = vmul.f32 %v522, %v829
        %v875 = vmul.f32 %v523, %v844
        %v876 = vmul.f32 %v524, %v844
        %v877 = vsub.f32 10.0, %v845
        %v878 = vsub.f32 10.0, %v846
        %v879 = vsub.f32 10.0, %v847
        %v880 = vsub.f32 10.0, %v848
        %v881 = vsub.f32 10.0, %v849
        %v882 = vsub.f32 10.0, %v850
        %v883 = vsub.f32 10.0, %v851
        %v884 = vsub.f32 10.0, %v852
        %v885 = vsub.f32 10.0, %v853
        %v886 = vsub.f32 10.0, %v854
        %v887 = vsub.f32 10.0, %v855
        %v888 = vsub.f32 10.0, %v856
        %v889 = vsub.f32 10.0, %v857
        %v890 = vsub.f32 10.0, %v858
        %v891 = vsub.f32 10.0, %v859
        %v892 = vsub.f32 10.0, %v860
        %v893 = vsub.f32 10.0, %v861
        %v894 = vsub.f32 10.0, %v862
        %v895 = vsub.f32 10.0, %v863
        %v896 = vsub.f32 10.0, %v864
        %v897 = vsub.f32 10.0, %v865
        %v898 = vsub.f32 10.0, %v866
        %v899 = vsub.f32 10.0, %v867
        %v900 = vsub.f32 10.0, %v868
        %v901 = vsub.f32 10.0, %v869
        %v902 = vsub.f32 10.0, %v870
        %v903 = vsub.f32 10.0, %v871
        %v904 = vsub.f32 10.0, %v872
        %v905 = vsub.f32 10.0, %v873
        %v906 = vsub.f32 10.0, %v874
        %v907 = vsub.f32 10.0, %v875
        %v908 = vsub.f32 10.0, %v876
        %v909 = vmul.f32 %v877, 1.442695
        %v910 = vpow.pop %v909
        %v911 = vmul.f32 %v878, 1.442695
        %v912 = vpow.pop %v911
        %v913 = vmul.f32 %v879, 1.442695
        %v914 = vpow.pop %v913
        %v915 = vmul.f32 %v880, 1.442695
        %v916 = vpow.pop %v915
        %v917 = vmul.f32 %v881, 1.442695
        %v918 = vpow.pop %v917
        %v919 = vmul.f32 %v882, 1.442695
        %v920 = vpow.pop %v919
        %v921 = vmul.f32 %v883, 1.442695
        %v922 = vpow.pop %v921
        %v923 = vmul.f32 %v884, 1.442695
        %v924 = vpow.pop %v923
        %v925 = vmul.f32 %v885, 1.442695
        %v926 = vpow.pop %v925
        %v927 = vmul.f32 %v886, 1.442695
        %v928 = vpow.pop %v927
        %v929 = vmul.f32 %v887, 1.442695
        %v930 = vpow.pop %v929
        %v931 = vmul.f32 %v888, 1.442695
        %v932 = vpow.pop %v931
        %v933 = vmul.f32 %v889, 1.442695
        %v934 = vpow.pop %v933
        %v935 = vmul.f32 %v890, 1.442695
        %v936 = vpow.pop %v935
        %v937 = vmul.f32 %v891, 1.442695
        %v938 = vpow.pop %v937
        %v939 = vmul.f32 %v892, 1.442695
        %v940 = vpow.pop %v939
        %v941 = vmul.f32 %v893, 1.442695
        %v942 = vpow.pop %v941
        %v943 = vmul.f32 %v894, 1.442695
        %v944 = vpow.pop %v943
        %v945 = vmul.f32 %v895, 1.442695
        %v946 = vpow.pop %v945
        %v947 = vmul.f32 %v896, 1.442695
        %v948 = vpow.pop %v947
        %v949 = vmul.f32 %v897, 1.442695
        %v950 = vpow.pop %v949
        %v951 = vmul.f32 %v898, 1.442695
        %v952 = vpow.pop %v951
        %v953 = vmul.f32 %v899, 1.442695
        %v954 = vpow.pop %v953
        %v955 = vmul.f32 %v900, 1.442695
        %v956 = vpow.pop %v955
        %v957 = vmul.f32 %v901, 1.442695
        %v958 = vpow.pop %v957
        %v959 = vmul.f32 %v902, 1.442695
        %v960 = vpow.pop %v959
        %v961 = vmul.f32 %v903, 1.442695
        %v962 = vpow.pop %v961
        %v963 = vmul.f32 %v904, 1.442695
        %v964 = vpow.pop %v963
        %v965 = vmul.f32 %v905, 1.442695
        %v966 = vpow.pop %v965
        %v967 = vmul.f32 %v906, 1.442695
        %v968 = vpow.pop %v967
        %v969 = vmul.f32 %v907, 1.442695
        %v970 = vpow.pop %v969
        %v971 = vmul.f32 %v908, 1.442695
        %v972 = vpow.pop %v971
        %v973 = vadd.f32 %v910, %v912
        %974 = vadd.xlane.f32.xlu0 %v973
        %v975 = vpop.xlane.xlu0 %974
        %v976 = vadd.f32 %v914, %v916
        %977 = vadd.xlane.f32.xlu0 %v976
        %v978 = vpop.xlane.xlu0 %977
        %v979 = vadd.f32 %v918, %v920
        %980 = vadd.xlane.f32.xlu0 %v979
        %v981 = vpop.xlane.xlu0 %980
        %v982 = vadd.f32 %v922, %v924
        %983 = vadd.xlane.f32.xlu0 %v982
        %v984 = vpop.xlane.xlu0 %983
        %v985 = vadd.f32 %v926, %v928
        %986 = vadd.xlane.f32.xlu0 %v985
        %v987 = vpop.xlane.xlu0 %986
        %v988 = vadd.f32 %v930, %v932
        %989 = vadd.xlane.f32.xlu0 %v988
        %v990 = vpop.xlane.xlu0 %989
        %v991 = vadd.f32 %v934, %v936
        %992 = vadd.xlane.f32.xlu0 %v991
        %v993 = vpop.xlane.xlu0 %992
        %v994 = vadd.f32 %v938, %v940
        %995 = vadd.xlane.f32.xlu0 %v994
        %v996 = vpop.xlane.xlu0 %995
        %v997 = vadd.f32 %v942, %v944
        %998 = vadd.xlane.f32.xlu0 %v997
        %v999 = vpop.xlane.xlu0 %998
        %v1000 = vadd.f32 %v946, %v948
        %1001 = vadd.xlane.f32.xlu0 %v1000
        %v1002 = vpop.xlane.xlu0 %1001
        %v1003 = vadd.f32 %v950, %v952
        %1004 = vadd.xlane.f32.xlu0 %v1003
        %v1005 = vpop.xlane.xlu0 %1004
        %v1006 = vadd.f32 %v954, %v956
        %1007 = vadd.xlane.f32.xlu0 %v1006
        %v1008 = vpop.xlane.xlu0 %1007
        %v1009 = vadd.f32 %v958, %v960
        %1010 = vadd.xlane.f32.xlu0 %v1009
        %v1011 = vpop.xlane.xlu0 %1010
        %v1012 = vadd.f32 %v962, %v964
        %1013 = vadd.xlane.f32.xlu0 %v1012
        %v1014 = vpop.xlane.xlu0 %1013
        %v1015 = vadd.f32 %v966, %v968
        %1016 = vadd.xlane.f32.xlu0 %v1015
        %v1017 = vpop.xlane.xlu0 %1016
        %v1018 = vadd.f32 %v970, %v972
        %1019 = vadd.xlane.f32.xlu0 %v1018
        %v1020 = vpop.xlane.xlu0 %1019
        %v1021 = vadd.f32 %v975, 1e-08
        %v1022 = vadd.f32 %v978, 1e-08
        %v1023 = vadd.f32 %v981, 1e-08
        %v1024 = vadd.f32 %v984, 1e-08
        %v1025 = vadd.f32 %v987, 1e-08
        %v1026 = vadd.f32 %v990, 1e-08
        %v1027 = vadd.f32 %v993, 1e-08
        %v1028 = vadd.f32 %v996, 1e-08
        %v1029 = vadd.f32 %v999, 1e-08
        %v1030 = vadd.f32 %v1002, 1e-08
        %v1031 = vadd.f32 %v1005, 1e-08
        %v1032 = vadd.f32 %v1008, 1e-08
        %v1033 = vadd.f32 %v1011, 1e-08
        %v1034 = vadd.f32 %v1014, 1e-08
        %v1035 = vadd.f32 %v1017, 1e-08
        %v1036 = vadd.f32 %v1020, 1e-08
        %v1037 = vrcp.pop %v1021
        %v1038 = vmul.f32 %v1021, %v1037
        %v1039 = vsub.f32 1.0, %v1038
        %v1040 = vmul.f32 %v1037, %v1039
        %v1041 = vadd.f32 %v1037, %v1040
        %vm1042 = vweird.f32 %v1021
        %vm1043 = vweird.f32 %v1037
        %vm1044 = vmor %vm1042, %vm1043
        %v1045 = vsel %vm1044, %v1037, %v1041
        %v1046 = vand.u32 2147483647, %v1021
        %vm1047 = vcmp.eq.f32.partialorder %v1046, 8.507059e+37
        %v1048 = vand.u32 %v1021, 2147483648
        %v1049 = vor.u32 1.1754944e-38, %v1048
        %v1050 = vsel %vm1047, %v1049, %v1045
        %v1051 = vmul.f32 1.0, %v1050
        %v1052 = vrcp.pop %v1022
        %v1053 = vmul.f32 %v1022, %v1052
        %v1054 = vsub.f32 1.0, %v1053
        %v1055 = vmul.f32 %v1052, %v1054
        %v1056 = vadd.f32 %v1052, %v1055
        %vm1057 = vweird.f32 %v1022
        %vm1058 = vweird.f32 %v1052
        %vm1059 = vmor %vm1057, %vm1058
        %v1060 = vsel %vm1059, %v1052, %v1056
        %v1061 = vand.u32 2147483647, %v1022
        %vm1062 = vcmp.eq.f32.partialorder %v1061, 8.507059e+37
        %v1063 = vand.u32 %v1022, 2147483648
        %v1064 = vor.u32 1.1754944e-38, %v1063
        %v1065 = vsel %vm1062, %v1064, %v1060
        %v1066 = vmul.f32 1.0, %v1065
        %v1067 = vrcp.pop %v1023
        %v1068 = vmul.f32 %v1023, %v1067
        %v1069 = vsub.f32 1.0, %v1068
        %v1070 = vmul.f32 %v1067, %v1069
        %v1071 = vadd.f32 %v1067, %v1070
        %vm1072 = vweird.f32 %v1023
        %vm1073 = vweird.f32 %v1067
        %vm1074 = vmor %vm1072, %vm1073
        %v1075 = vsel %vm1074, %v1067, %v1071
        %v1076 = vand.u32 2147483647, %v1023
        %vm1077 = vcmp.eq.f32.partialorder %v1076, 8.507059e+37
        %v1078 = vand.u32 %v1023, 2147483648
        %v1079 = vor.u32 1.1754944e-38, %v1078
        %v1080 = vsel %vm1077, %v1079, %v1075
        %v1081 = vmul.f32 1.0, %v1080
        %v1082 = vrcp.pop %v1024
        %v1083 = vmul.f32 %v1024, %v1082
        %v1084 = vsub.f32 1.0, %v1083
        %v1085 = vmul.f32 %v1082, %v1084
        %v1086 = vadd.f32 %v1082, %v1085
        %vm1087 = vweird.f32 %v1024
        %vm1088 = vweird.f32 %v1082
        %vm1089 = vmor %vm1087, %vm1088
        %v1090 = vsel %vm1089, %v1082, %v1086
        %v1091 = vand.u32 2147483647, %v1024
        %vm1092 = vcmp.eq.f32.partialorder %v1091, 8.507059e+37
        %v1093 = vand.u32 %v1024, 2147483648
        %v1094 = vor.u32 1.1754944e-38, %v1093
        %v1095 = vsel %vm1092, %v1094, %v1090
        %v1096 = vmul.f32 1.0, %v1095
        %v1097 = vrcp.pop %v1025
        %v1098 = vmul.f32 %v1025, %v1097
        %v1099 = vsub.f32 1.0, %v1098
        %v1100 = vmul.f32 %v1097, %v1099
        %v1101 = vadd.f32 %v1097, %v1100
        %vm1102 = vweird.f32 %v1025
        %vm1103 = vweird.f32 %v1097
        %vm1104 = vmor %vm1102, %vm1103
        %v1105 = vsel %vm1104, %v1097, %v1101
        %v1106 = vand.u32 2147483647, %v1025
        %vm1107 = vcmp.eq.f32.partialorder %v1106, 8.507059e+37
        %v1108 = vand.u32 %v1025, 2147483648
        %v1109 = vor.u32 1.1754944e-38, %v1108
        %v1110 = vsel %vm1107, %v1109, %v1105
        %v1111 = vmul.f32 1.0, %v1110
        %v1112 = vrcp.pop %v1026
        %v1113 = vmul.f32 %v1026, %v1112
        %v1114 = vsub.f32 1.0, %v1113
        %v1115 = vmul.f32 %v1112, %v1114
        %v1116 = vadd.f32 %v1112, %v1115
        %vm1117 = vweird.f32 %v1026
        %vm1118 = vweird.f32 %v1112
        %vm1119 = vmor %vm1117, %vm1118
        %v1120 = vsel %vm1119, %v1112, %v1116
        %v1121 = vand.u32 2147483647, %v1026
        %vm1122 = vcmp.eq.f32.partialorder %v1121, 8.507059e+37
        %v1123 = vand.u32 %v1026, 2147483648
        %v1124 = vor.u32 1.1754944e-38, %v1123
        %v1125 = vsel %vm1122, %v1124, %v1120
        %v1126 = vmul.f32 1.0, %v1125
        %v1127 = vrcp.pop %v1027
        %v1128 = vmul.f32 %v1027, %v1127
        %v1129 = vsub.f32 1.0, %v1128
        %v1130 = vmul.f32 %v1127, %v1129
        %v1131 = vadd.f32 %v1127, %v1130
        %vm1132 = vweird.f32 %v1027
        %vm1133 = vweird.f32 %v1127
        %vm1134 = vmor %vm1132, %vm1133
        %v1135 = vsel %vm1134, %v1127, %v1131
        %v1136 = vand.u32 2147483647, %v1027
        %vm1137 = vcmp.eq.f32.partialorder %v1136, 8.507059e+37
        %v1138 = vand.u32 %v1027, 2147483648
        %v1139 = vor.u32 1.1754944e-38, %v1138
        %v1140 = vsel %vm1137, %v1139, %v1135
        %v1141 = vmul.f32 1.0, %v1140
        %v1142 = vrcp.pop %v1028
        %v1143 = vmul.f32 %v1028, %v1142
        %v1144 = vsub.f32 1.0, %v1143
        %v1145 = vmul.f32 %v1142, %v1144
        %v1146 = vadd.f32 %v1142, %v1145
        %vm1147 = vweird.f32 %v1028
        %vm1148 = vweird.f32 %v1142
        %vm1149 = vmor %vm1147, %vm1148
        %v1150 = vsel %vm1149, %v1142, %v1146
        %v1151 = vand.u32 2147483647, %v1028
        %vm1152 = vcmp.eq.f32.partialorder %v1151, 8.507059e+37
        %v1153 = vand.u32 %v1028, 2147483648
        %v1154 = vor.u32 1.1754944e-38, %v1153
        %v1155 = vsel %vm1152, %v1154, %v1150
        %v1156 = vmul.f32 1.0, %v1155
        %v1157 = vrcp.pop %v1029
        %v1158 = vmul.f32 %v1029, %v1157
        %v1159 = vsub.f32 1.0, %v1158
        %v1160 = vmul.f32 %v1157, %v1159
        %v1161 = vadd.f32 %v1157, %v1160
        %vm1162 = vweird.f32 %v1029
        %vm1163 = vweird.f32 %v1157
        %vm1164 = vmor %vm1162, %vm1163
        %v1165 = vsel %vm1164, %v1157, %v1161
        %v1166 = vand.u32 2147483647, %v1029
        %vm1167 = vcmp.eq.f32.partialorder %v1166, 8.507059e+37
        %v1168 = vand.u32 %v1029, 2147483648
        %v1169 = vor.u32 1.1754944e-38, %v1168
        %v1170 = vsel %vm1167, %v1169, %v1165
        %v1171 = vmul.f32 1.0, %v1170
        %v1172 = vrcp.pop %v1030
        %v1173 = vmul.f32 %v1030, %v1172
        %v1174 = vsub.f32 1.0, %v1173
        %v1175 = vmul.f32 %v1172, %v1174
        %v1176 = vadd.f32 %v1172, %v1175
        %vm1177 = vweird.f32 %v1030
        %vm1178 = vweird.f32 %v1172
        %vm1179 = vmor %vm1177, %vm1178
        %v1180 = vsel %vm1179, %v1172, %v1176
        %v1181 = vand.u32 2147483647, %v1030
        %vm1182 = vcmp.eq.f32.partialorder %v1181, 8.507059e+37
        %v1183 = vand.u32 %v1030, 2147483648
        %v1184 = vor.u32 1.1754944e-38, %v1183
        %v1185 = vsel %vm1182, %v1184, %v1180
        %v1186 = vmul.f32 1.0, %v1185
        %v1187 = vrcp.pop %v1031
        %v1188 = vmul.f32 %v1031, %v1187
        %v1189 = vsub.f32 1.0, %v1188
        %v1190 = vmul.f32 %v1187, %v1189
        %v1191 = vadd.f32 %v1187, %v1190
        %vm1192 = vweird.f32 %v1031
        %vm1193 = vweird.f32 %v1187
        %vm1194 = vmor %vm1192, %vm1193
        %v1195 = vsel %vm1194, %v1187, %v1191
        %v1196 = vand.u32 2147483647, %v1031
        %vm1197 = vcmp.eq.f32.partialorder %v1196, 8.507059e+37
        %v1198 = vand.u32 %v1031, 2147483648
        %v1199 = vor.u32 1.1754944e-38, %v1198
        %v1200 = vsel %vm1197, %v1199, %v1195
        %v1201 = vmul.f32 1.0, %v1200
        %v1202 = vrcp.pop %v1032
        %v1203 = vmul.f32 %v1032, %v1202
        %v1204 = vsub.f32 1.0, %v1203
        %v1205 = vmul.f32 %v1202, %v1204
        %v1206 = vadd.f32 %v1202, %v1205
        %vm1207 = vweird.f32 %v1032
        %vm1208 = vweird.f32 %v1202
        %vm1209 = vmor %vm1207, %vm1208
        %v1210 = vsel %vm1209, %v1202, %v1206
        %v1211 = vand.u32 2147483647, %v1032
        %vm1212 = vcmp.eq.f32.partialorder %v1211, 8.507059e+37
        %v1213 = vand.u32 %v1032, 2147483648
        %v1214 = vor.u32 1.1754944e-38, %v1213
        %v1215 = vsel %vm1212, %v1214, %v1210
        %v1216 = vmul.f32 1.0, %v1215
        %v1217 = vrcp.pop %v1033
        %v1218 = vmul.f32 %v1033, %v1217
        %v1219 = vsub.f32 1.0, %v1218
        %v1220 = vmul.f32 %v1217, %v1219
        %v1221 = vadd.f32 %v1217, %v1220
        %vm1222 = vweird.f32 %v1033
        %vm1223 = vweird.f32 %v1217
        %vm1224 = vmor %vm1222, %vm1223
        %v1225 = vsel %vm1224, %v1217, %v1221
        %v1226 = vand.u32 2147483647, %v1033
        %vm1227 = vcmp.eq.f32.partialorder %v1226, 8.507059e+37
        %v1228 = vand.u32 %v1033, 2147483648
        %v1229 = vor.u32 1.1754944e-38, %v1228
        %v1230 = vsel %vm1227, %v1229, %v1225
        %v1231 = vmul.f32 1.0, %v1230
        %v1232 = vrcp.pop %v1034
        %v1233 = vmul.f32 %v1034, %v1232
        %v1234 = vsub.f32 1.0, %v1233
        %v1235 = vmul.f32 %v1232, %v1234
        %v1236 = vadd.f32 %v1232, %v1235
        %vm1237 = vweird.f32 %v1034
        %vm1238 = vweird.f32 %v1232
        %vm1239 = vmor %vm1237, %vm1238
        %v1240 = vsel %vm1239, %v1232, %v1236
        %v1241 = vand.u32 2147483647, %v1034
        %vm1242 = vcmp.eq.f32.partialorder %v1241, 8.507059e+37
        %v1243 = vand.u32 %v1034, 2147483648
        %v1244 = vor.u32 1.1754944e-38, %v1243
        %v1245 = vsel %vm1242, %v1244, %v1240
        %v1246 = vmul.f32 1.0, %v1245
        %v1247 = vrcp.pop %v1035
        %v1248 = vmul.f32 %v1035, %v1247
        %v1249 = vsub.f32 1.0, %v1248
        %v1250 = vmul.f32 %v1247, %v1249
        %v1251 = vadd.f32 %v1247, %v1250
        %vm1252 = vweird.f32 %v1035
        %vm1253 = vweird.f32 %v1247
        %vm1254 = vmor %vm1252, %vm1253
        %v1255 = vsel %vm1254, %v1247, %v1251
        %v1256 = vand.u32 2147483647, %v1035
        %vm1257 = vcmp.eq.f32.partialorder %v1256, 8.507059e+37
        %v1258 = vand.u32 %v1035, 2147483648
        %v1259 = vor.u32 1.1754944e-38, %v1258
        %v1260 = vsel %vm1257, %v1259, %v1255
        %v1261 = vmul.f32 1.0, %v1260
        %v1262 = vrcp.pop %v1036
        %v1263 = vmul.f32 %v1036, %v1262
        %v1264 = vsub.f32 1.0, %v1263
        %v1265 = vmul.f32 %v1262, %v1264
        %v1266 = vadd.f32 %v1262, %v1265
        %vm1267 = vweird.f32 %v1036
        %vm1268 = vweird.f32 %v1262
        %vm1269 = vmor %vm1267, %vm1268
        %v1270 = vsel %vm1269, %v1262, %v1266
        %v1271 = vand.u32 2147483647, %v1036
        %vm1272 = vcmp.eq.f32.partialorder %v1271, 8.507059e+37
        %v1273 = vand.u32 %v1036, 2147483648
        %v1274 = vor.u32 1.1754944e-38, %v1273
        %v1275 = vsel %vm1272, %v1274, %v1270
        %v1276 = vmul.f32 1.0, %v1275
        %v1277 = vmul.f32 %v910, %v1051
        %v1278 = vmul.f32 %v912, %v1051
        %v1279 = vmul.f32 %v914, %v1066
        %v1280 = vmul.f32 %v916, %v1066
        %v1281 = vmul.f32 %v918, %v1081
        %v1282 = vmul.f32 %v920, %v1081
        %v1283 = vmul.f32 %v922, %v1096
        %v1284 = vmul.f32 %v924, %v1096
        %v1285 = vmul.f32 %v926, %v1111
        %v1286 = vmul.f32 %v928, %v1111
        %v1287 = vmul.f32 %v930, %v1126
        %v1288 = vmul.f32 %v932, %v1126
        %v1289 = vmul.f32 %v934, %v1141
        %v1290 = vmul.f32 %v936, %v1141
        %v1291 = vmul.f32 %v938, %v1156
        %v1292 = vmul.f32 %v940, %v1156
        %v1293 = vmul.f32 %v942, %v1171
        %v1294 = vmul.f32 %v944, %v1171
        %v1295 = vmul.f32 %v946, %v1186
        %v1296 = vmul.f32 %v948, %v1186
        %v1297 = vmul.f32 %v950, %v1201
        %v1298 = vmul.f32 %v952, %v1201
        %v1299 = vmul.f32 %v954, %v1216
        %v1300 = vmul.f32 %v956, %v1216
        %v1301 = vmul.f32 %v958, %v1231
        %v1302 = vmul.f32 %v960, %v1231
        %v1303 = vmul.f32 %v962, %v1246
        %v1304 = vmul.f32 %v964, %v1246
        %v1305 = vmul.f32 %v966, %v1261
        %v1306 = vmul.f32 %v968, %v1261
        %v1307 = vmul.f32 %v970, %v1276
        %v1308 = vmul.f32 %v972, %v1276
        %v1309 = vld [vmem:[#allocation3] sm:$0x3]
        %v1310 = vmax.f32 %v1277, %v1281
        %v1311 = vmax.f32 %v1279, %v1283
        %v1312 = vmax.f32 %v1310, %v1285
        %v1313 = vmax.f32 %v1311, %v1287
        %v1314 = vmax.f32 %v1312, %v1289
        %v1315 = vmax.f32 %v1313, %v1291
        %v1316 = vmax.f32 %v1314, %v1293
        %v1317 = vmax.f32 %v1315, %v1295
        %v1318 = vmax.f32 %v1316, %v1297
        %v1319 = vmax.f32 %v1317, %v1299
        %v1320 = vmax.f32 %v1318, %v1301
        %v1321 = vmax.f32 %v1319, %v1303
        %v1322 = vmax.f32 %v1320, %v1305
        %v1323 = vmax.f32 %v1321, %v1307
        %v1324 = vmax.f32 %v1322, %v1323
        %v1325 = vrot.slane %v1324, 4
        %v1326 = vmax.f32 %v1324, %v1325
        %v1327 = vrot.slane %v1326, 2
        %v1328 = vmax.f32 %v1326, %v1327
        %v1329 = vrot.slane %v1328, 1
        %v1330 = vmax.f32 %v1328, %v1329
        %v1331 = vmax.f32 %v1278, %v1282
        %v1332 = vmax.f32 %v1280, %v1284
        %v1333 = vmax.f32 %v1331, %v1286
        %v1334 = vmax.f32 %v1332, %v1288
        %v1335 = vmax.f32 %v1333, %v1290
        %v1336 = vmax.f32 %v1334, %v1292
        %v1337 = vmax.f32 %v1335, %v1294
        %v1338 = vmax.f32 %v1336, %v1296
        %v1339 = vmax.f32 %v1337, %v1298
        %v1340 = vmax.f32 %v1338, %v1300
        %v1341 = vmax.f32 %v1339, %v1302
        %v1342 = vmax.f32 %v1340, %v1304
        %v1343 = vmax.f32 %v1341, %v1306
        %v1344 = vmax.f32 %v1342, %v1308
        %v1345 = vmax.f32 %v1343, %v1344
        %v1346 = vrot.slane %v1345, 4
        %v1347 = vmax.f32 %v1345, %v1346
        %v1348 = vrot.slane %v1347, 2
        %v1349 = vmax.f32 %v1347, %v1348
        %v1350 = vrot.slane %v1349, 1
        %v1351 = vmax.f32 %v1349, %v1350
        %v1354 = vrot.slane %v1351, 7
        %vm1355 = vcmask 1040384
        %v1356 = vsel %vm1355, %v1330, %v1354
        %v1358 = vmax.f32 %v1309, %v1356
        %v1359 = vlaneseq
        %vm1360 = vcmp.ge.s32.totalorder %v1359, 0
        %vm1361 = vcmp.lt.s32.totalorder %v1359, 256
        %vm1362 = vmand %vm1360, %vm1361
        %1363 = vst.msk [vmem:[#allocation3] sm:$0x3] %vm1362, %v1358
        %p1364 = scmp.eq.s32.totalorder %s25, 1
        // Predicated region
        $region42: #{tpu_custom_call.1} parent=27 // pred_check
          %p1365 = pneg %p1364
        $region43: #{tpu_custom_call.1} parent=27 // pred_check_branch
          %1367 = sbr.rel (%p1365) target = $region45
        $region44: #{tpu_custom_call.1} parent=27 // pred_region
          %v1368 = vld [vmem:[#allocation3] sm:$0x3]
          %v1370 = vperm.slane %v1368, 0
          %v1371 = vperm.slane %v1368, 1
          %v1374 = vsel %vm1355, %v1370, 0.0
          %v1375 = vsel %vm1355, %v1371, 0.0
          %v1376 = vadd.f32 %v1374, %v1375
          %1377 = vadd.xlane.f32.xlu0 %v1376
          %v1378 = vpop.xlane.xlu0 %1377
          %v1379 = vrot.slane %v1378, 4
          %v1380 = vadd.f32 %v1378, %v1379
          %v1381 = vrot.slane %v1380, 2
          %v1382 = vadd.f32 %v1380, %v1381
          %v1383 = vrot.slane %v1382, 1
          %v1384 = vadd.f32 %v1382, %v1383
          %s1385 = vtos %v1384
          %v1386 = vrcp.pop 256.0
          %v1387 = vmul.f32 256.0, %v1386
          %v1388 = vsub.f32 1.0, %v1387
          %v1389 = vmul.f32 %v1386, %v1388
          %v1390 = vadd.f32 %v1386, %v1389
          %vm1391 = vweird.f32 %v1386
          %v1392 = vsel %vm1391, %v1386, %v1390
          %s1393 = vtos %v1392
          %s1394 = smul.f32 %s1385, %s1393
          %v1395 = vstv %s1394
          %1396 = vst [vmem:[%s177] sm:$0xff] %v1395
        $region45: #{tpu_custom_call.1} parent=27 // pred_fallthru
          _
        %s1397 = sand.u32 %s89, 1
        %s1398 = scalar_lea.sflag [#allocation6], %s1397
        %s1399 = sand.u32 %s89, 1
        %s1400 = smul.addr %s1399, 8
        %s1401 = scalar_lea.vmem [#allocation7], %s1400
        // Predicated region
        $region46: #{tpu_custom_call.1} parent=27 // pred_check
          %p1402 = pneg %p99
        $region47: #{tpu_custom_call.1} parent=27 // pred_check_branch
          %1404 = sbr.rel (%p1402) target = $region49
        $region48: #{tpu_custom_call.1} parent=27 // pred_region
          %1406 = vsyncadd %s1398, 0
          %s1407 = smul.addr %s24, 8
          %s1408 = scalar_lea.hbm %s3, %s1407
          %s1410 = sshll.u32 %s1401, 4
          %s1411 = int_to_ptr.vmem [resolvable:$true] %s1410
          %s1412 = sshll.u32 %s1408, 4
          %s1413 = int_to_ptr.hbm [resolvable:$true] %s1412
          %1415 = dma.vmem_to_hbm [thread:$0]  %s1411, 128, %s1413, %s1398
        $region49: #{tpu_custom_call.1} parent=27 // pred_fallthru
          _
      $region28: #{tpu_custom_call.1} parent=5 // pred_fallthru
        _
      %p1416 = scmp.le.s32.totalorder 2, %s15
      // Predicated region
      $region50: #{tpu_custom_call.1} parent=5 // pred_check
        %p1417 = pneg %p1416
      $region51: #{tpu_custom_call.1} parent=5 // pred_check_branch
        %1419 = sbr.rel (%p1417) target = $region53
      $region52: #{tpu_custom_call.1} parent=5 // pred_region
        %s1420 = ssub.s32 %s15, 2
        // Predicated region
        $region54: #{tpu_custom_call.1} parent=52 // pred_check
          %p1421 = pneg %p105
        $region55: #{tpu_custom_call.1} parent=52 // pred_check_branch
          %1423 = sbr.rel (%p1421) target = $region57
        $region56: #{tpu_custom_call.1} parent=52 // pred_region
          %s1424 = sand.u32 %s90, 1
          %s1425 = scalar_lea.sflag [#allocation6], %s1424
          %s1426 = sand.u32 %s90, 1
          %s1427 = smul.addr %s1426, 8
          %s1428 = scalar_lea.vmem [#allocation7], %s1427
          %1430 = dma.done %s1425, 128
        $region57: #{tpu_custom_call.1} parent=52 // pred_fallthru
          _
      $region53: #{tpu_custom_call.1} parent=5 // pred_fallthru
        _
    $region6: #{tpu_custom_call.1} parent=1 // loop_footer
      %s19 = sadd.s32 1, %s15
    $region7: #{tpu_custom_call.1} parent=1 // loop_footer_branch
      %14 = sbr.rel target = $region3
    $region8: #{tpu_custom_call.1} parent=1 // loop_exit
      _
    %1431 = vsyncpa [#allocation5], 1
    %s1432 = scalar_lea.sflag [#allocation5], 1
    %1433 = vsyncpa %s1432, 1
    %1434 = vsyncpa [#allocation6], 1
    %s1435 = scalar_lea.sflag [#allocation6], 1
    %1436 = vsyncpa %s1435, 1

</llo_original>
